<compile_context>
chip_gen: v7x
topology: tpu7x:2x2x1
jax: 0.10.0
libtpu: 0.0.40
codegen_flags: <defaults>
</compile_context>

<pallas_src>
import functools
import math

import jax
import jax.numpy as jnp
from jax.experimental import pallas as pl
from jax.experimental.pallas import tpu as pltpu


def _round_up(x, m):
    return -(-x // m) * m


def _tpu_defaults():
    """Best-effort generation detection; conservative fallbacks everywhere."""
    group_target = 8                 # block-diag packs 8 graphs -> 128-wide K
    num_tc = 1                       # TensorCores per chip (v7x has 2)
    vmem_limit = 48 * 1024 * 1024    # fits v7x's 64 MiB/TC with headroom
    try:
        kind = jax.devices()[0].device_kind.lower()
        if ("v6" in kind) or ("v7" in kind) or ("7x" in kind):
            group_target = 16        # 256-wide MXU contraction on v6e/v7x
        if ("v7" in kind) or ("7x" in kind):
            num_tc = 2
    except Exception:
        pass
    try:
        cap = int(pltpu.get_tpu_info().vmem_capacity_bytes)
        # ~96 MiB on 128 MiB chips (v5e/v6e), 48 MiB on v7x's 64 MiB/TC.
        vmem_limit = min((cap * 3) // 4, 100 * 1024 * 1024)
    except Exception:
        pass
    return group_target, num_tc, int(vmem_limit)


def _choose_batch_tile(batch, node_num, feature_dim, group, itemsize,
                       num_tc, vmem_limit, target_rows=1024):
    """Pick the per-grid-step batch tile Bt.

    Legality: Bt | batch, group | Bt, and (Bt % 8 == 0 or Bt == batch) so the
    (Bt, N*F) output block obeys the (8, 128) layout rule.
    Preference: padded VMEM footprint fits; grid a multiple of num_tc (keeps
    both v7x TensorCores busy); ~target_rows folded rows per step (amortizes
    the ~0.35 us per-step overhead, big MXU M); then fewest grid steps.
    """
    N, F = node_num, feature_dim
    # Padded VMEM per batch element (double-buffered obs block + out block).
    obs_elem = _round_up(N, 8) * _round_up(N + F, 128) * itemsize * 2
    out_elem = _round_up(N * F, 128) * 4 * 2
    per_elem = obs_elem + out_elem
    fixed = 8 * 1024 * 1024          # block-diag scratch, weights, intermediates
    max_elems = max(group, (vmem_limit - fixed) // per_elem)

    cands = [d for d in range(group, batch + 1, group)
             if batch % d == 0 and (d % 8 == 0 or d == batch)]
    if not cands:
        cands = [batch]

    def key(d):
        steps = batch // d
        rows = d * N
        return (
            0 if d <= max_elems else 1,          # fits the VMEM budget
            0 if steps % num_tc == 0 else 1,     # even work across TensorCores
            abs(rows - target_rows),             # near the per-step sweet spot
            steps,                               # then fewest grid steps
        )
    return min(cands, key=key)


def _make_gnn_kernel(num_layers, node_num, feature_dim, group, batch_tile,
                     compute_dtype):
    """Kernel refs: (obs_ref, w_0..w_{L-1}, o_ref, a_bd_ref)."""
    N, F, G = node_num, feature_dim, group
    num_groups = batch_tile // G

    def kernel(*refs):
        obs_ref = refs[0]
        w_refs = refs[1:1 + num_layers]
        o_ref = refs[1 + num_layers]
        a_bd_ref = refs[2 + num_layers]

        # Weights are tiny and the layer count is static: load once per step.
        ws = [w_ref[...] for w_ref in w_refs]

        # Off-diagonal entries of the block-diagonal adjacency are zero for
        # every group; zero the scratch once per grid step, groups only
        # overwrite the diagonal blocks.
        a_bd_ref[...] = jnp.zeros_like(a_bd_ref)

        def process_group(row0):
            # --- block-diagonal adjacency: packs G graphs into one
            #     (G*N, G*N) operand so A @ support runs at native MXU
            #     contraction width instead of G tiny K=N matmuls.
            #     Built once per group, reused by every layer.
            a_grp = obs_ref[pl.ds(row0, G), :, :N]              # (G, N, N)
            for i in range(G):
                a_bd_ref[i * N:(i + 1) * N, i * N:(i + 1) * N] = a_grp[i]
            a_bd = a_bd_ref[...]

            # --- stacked node features: (G, N, F) -> (G*N, F) leading merge.
            h = obs_ref[pl.ds(row0, G), :, N:N + F].reshape(G * N, F)

            h_f32 = None
            for w in ws:
                # support = H @ W : (G*N, Fin) @ (Fin, Fout), f32 accumulation.
                support = jnp.dot(h, w, preferred_element_type=jnp.float32)
                # H = relu(A_bd @ support): one full-width MXU matmul for the
                # whole group; relu stays in f32 on the VPU.
                h_f32 = jnp.maximum(
                    jnp.dot(a_bd, support.astype(compute_dtype),
                            preferred_element_type=jnp.float32),
                    0.0)
                h = h_f32.astype(compute_dtype)

            # --- lane-dense output: scatter each node's F features into the
            #     (G, N*F) rows of the output block, so the HBM writeback is a
            #     dense 128-lane-wide stream (no 8-wide strided rows).
            # TODO(synk): replace with a single h_f32.reshape(G, N*F) store once
            # Mosaic's minor-dim-merge relayout is verified for this shape.
            h3 = h_f32.reshape(G, N, F)
            for n in range(N):
                o_ref[pl.ds(row0, G), n * F:(n + 1) * F] = (
                    h3[:, n, :].astype(o_ref.dtype))

        if num_groups == 1:
            process_group(0)
        else:
            @pl.loop(0, num_groups)
            def _(g_idx):
                process_group(pl.multiple_of(g_idx * G, G))

    return kernel


def gnn_forward(obs, weights, node_num, feature_dim, *,
                compute_dtype=jnp.float32, batch_tile=None, group_size=None):
    """Pallas implementation of GNN.forward.

    obs: (B, N, N + F) or (N, N + F); weights: [(F, H), ..., (H, F)].
    Returns the flattened embedding (B, N*F) or (N*F,) in float32.
    compute_dtype: f32 (default) or bf16 for matmul inputs (f32 accumulation);
    the bf16 path is MXU-native on v5e/v6e/v7x alike.
    """
    squeeze = obs.ndim == 2
    if squeeze:
        obs = obs[None]
    B, N, width = obs.shape
    assert N == node_num and width == node_num + feature_dim
    num_layers = len(weights)
    assert num_layers >= 1

    group_target, num_tc, vmem_limit = _tpu_defaults()
    if group_size is not None:
        group_target = group_size

    # Wrapper-side casts: matmul inputs arrive already in compute_dtype (halves
    # obs/weight HBM + VMEM bytes on the bf16 path and removes per-step VPU
    # cast work); relu and accumulation stay f32 inside the kernel.
    obs_c = obs.astype(compute_dtype)
    weights_c = [w.astype(compute_dtype) for w in weights]
    itemsize = jnp.dtype(compute_dtype).itemsize

    # Group size for block-diagonal MXU packing; pad the batch so it tiles
    # evenly into groups (padded rows are all-zero -> relu(0) = 0, sliced off).
    if B >= group_target:
        group = group_target
        B_pad = _round_up(B, group)
    else:
        group = B
        B_pad = B
    if B_pad != B:
        pad = jnp.zeros((B_pad - B, N, width), obs_c.dtype)
        obs_c = jnp.concatenate([obs_c, pad], axis=0)

    if batch_tile is None:
        batch_tile = _choose_batch_tile(B_pad, N, feature_dim, group, itemsize,
                                        num_tc, vmem_limit)
    Bt = batch_tile
    assert B_pad % Bt == 0 and Bt % group == 0
    grid = (B_pad // Bt,)

    kernel = _make_gnn_kernel(num_layers, N, feature_dim, group, Bt,
                              compute_dtype)

    # Single fused obs tile (one DMA feeds both the adjacency and the features).
    in_specs = [pl.BlockSpec((Bt, N, N + feature_dim), lambda i: (i, 0, 0))]
    for w in weights_c:
        # Full weight resident in VMEM; constant block index -> fetched once.
        in_specs.append(pl.BlockSpec(w.shape, lambda i: (0, 0)))

    # Lane-dense output: (B, N*F) rows (N*F = 128 here) -> full-width stores
    # and a contiguous HBM writeback instead of (B*N, F) masked/strided rows.
    out_specs = pl.BlockSpec((Bt, N * feature_dim), lambda i: (i, 0))

    flops = 0
    fin = feature_dim
    for w in weights:
        fout = int(w.shape[1])
        flops += 2 * B_pad * N * fin * fout     # H @ W
        flops += 2 * B_pad * N * N * fout       # A @ support (logical)
        fin = fout
    bytes_accessed = (int(obs_c.size) * itemsize
                      + sum(int(w.size) * itemsize for w in weights_c)
                      + B_pad * N * feature_dim * 4)

    out = pl.pallas_call(
        kernel,
        out_shape=jax.ShapeDtypeStruct((B_pad, N * feature_dim), jnp.float32),
        grid_spec=pltpu.PrefetchScalarGridSpec(
            num_scalar_prefetch=0,
            grid=grid,
            in_specs=in_specs,
            out_specs=out_specs,
            scratch_shapes=[pltpu.VMEM((group * N, group * N), compute_dtype)],
        ),
        compiler_params=pltpu.CompilerParams(
            dimension_semantics=("parallel",),
            vmem_limit_bytes=int(vmem_limit),
        ),
        cost_estimate=pl.CostEstimate(
            flops=int(flops), transcendentals=0,
            bytes_accessed=int(bytes_accessed)),
    )(obs_c, *weights_c)

    embedding = out[:B]
    if squeeze:
        embedding = embedding[0]
    return embedding


def init_gnn_weights(key, feature_dim, hidden_size, layers):
    """Xavier-uniform init matching the PyTorch module's weight shapes."""
    ws = []
    for i in range(layers):
        if i == 0:
            in_dim, out_dim = feature_dim, hidden_size
        elif i == layers - 1:
            in_dim, out_dim = hidden_size, feature_dim
        else:
            in_dim, out_dim = hidden_size, hidden_size
        key, sub = jax.random.split(key)
        bound = math.sqrt(6.0 / (in_dim + out_dim))
        ws.append(jax.random.uniform(
            sub, (in_dim, out_dim), jnp.float32, minval=-bound, maxval=bound))
    return ws


def gnn_reference(obs, weights, node_num, feature_dim,
                  compute_dtype=jnp.float32):
    """Pure-JAX reference (mirrors the kernel's casts for the bf16 path)."""
    squeeze = obs.ndim == 2
    if squeeze:
        obs = obs[None]
    obs = obs.astype(compute_dtype)
    A = obs[:, :, :node_num]
    H = obs[:, :, node_num:node_num + feature_dim]
    out = None
    for w in weights:
        w = w.astype(compute_dtype)
        support = jnp.einsum("bnf,fk->bnk", H, w,
                             preferred_element_type=jnp.float32)
        out = jnp.maximum(
            jnp.einsum("bij,bjk->bik", A, support.astype(compute_dtype),
                       preferred_element_type=jnp.float32),
            0.0)
        H = out.astype(compute_dtype)
    emb = out.reshape(out.shape[0], -1)
    return emb[0] if squeeze else emb


if __name__ == "__main__":
    node_num, feature_dim, hidden_size, layers = 16, 8, 32, 3
    key = jax.random.PRNGKey(0)
    k_obs, k_w, k_small = jax.random.split(key, 3)

    weights = init_gnn_weights(k_w, feature_dim, hidden_size, layers)

    # Batched path: exercises MXU block-diag grouping + the multi-step grid.
    batch = 64
    obs = jax.random.normal(
        k_obs, (batch, node_num, node_num + feature_dim), dtype=jnp.float32)

    fwd = jax.jit(functools.partial(
        gnn_forward, node_num=node_num, feature_dim=feature_dim))
    emb = jax.block_until_ready(fwd(obs, weights))
    ref = gnn_reference(obs, weights, node_num, feature_dim)
    assert emb.shape == (batch, node_num * feature_dim)
    assert jnp.allclose(emb, ref, atol=1e-5, rtol=1e-5), "f32 mismatch"

    # bf16-input / f32-accumulate path (MXU-native on v5e/v6e/v7x alike).
    fwd_bf16 = jax.jit(functools.partial(
        gnn_forward, node_num=node_num, feature_dim=feature_dim,
        compute_dtype=jnp.bfloat16))
    emb_bf16 = jax.block_until_ready(fwd_bf16(obs, weights))
    ref_bf16 = gnn_reference(obs, weights, node_num, feature_dim,
                             compute_dtype=jnp.bfloat16)
    assert jnp.allclose(emb_bf16, ref_bf16, atol=2e-2, rtol=2e-2), "bf16 mismatch"

    # Tiny batch (group smaller than the MXU-packing target).
    obs_small = jax.random.normal(
        k_small, (2, node_num, node_num + feature_dim), dtype=jnp.float32)
    emb_small = jax.block_until_ready(fwd(obs_small, weights))
    ref_small = gnn_reference(obs_small, weights, node_num, feature_dim)
    assert jnp.allclose(emb_small, ref_small, atol=1e-5, rtol=1e-5), \
        "small-batch mismatch"

    # Single-sample (2-D obs) path.
    emb_single = jax.block_until_ready(fwd(obs_small[0], weights))
    ref_single = gnn_reference(obs_small[0], weights, node_num, feature_dim)
    assert emb_single.shape == (node_num * feature_dim,)
    assert jnp.allclose(emb_single, ref_single, atol=1e-5, rtol=1e-5), \
        "2-D obs mismatch"

    print("KERNEL_OK")
</pallas_src>

<mosaic_0001>
module attributes {stable_mosaic.version = 11 : i64} {
  func.func @kernel(%arg0: i32, %arg1: memref<64x16x24xf32, #tpu.memory_space<vmem>>, %arg2: memref<8x32xf32, #tpu.memory_space<vmem>>, %arg3: memref<32x32xf32, #tpu.memory_space<vmem>>, %arg4: memref<32x8xf32, #tpu.memory_space<vmem>>, %arg5: memref<64x128xf32, #tpu.memory_space<vmem>>, %arg6: memref<128x128xf32, #tpu.memory_space<vmem>>) attributes {dimension_semantics = [#tpu.dimension_semantics<parallel>], iteration_bounds = array<i64: 1>, scalar_prefetch = 0 : i64, scratch_operands = 1 : i64, tpu.core_type = #tpu.core_type<tc>, window_params = [{transform_indices = @transform_0, window_bounds = array<i64: 64, 16, 24>}, {pipeline_mode = #tpu.pipeline_mode<synchronous>, transform_indices = @transform_1, window_bounds = array<i64: 8, 32>}, {pipeline_mode = #tpu.pipeline_mode<synchronous>, transform_indices = @transform_2, window_bounds = array<i64: 32, 32>}, {pipeline_mode = #tpu.pipeline_mode<synchronous>, transform_indices = @transform_3, window_bounds = array<i64: 32, 8>}, {transform_indices = @transform_4, window_bounds = array<i64: 64, 128>}]} {
    %c0 = arith.constant 0 : index
    %c0_0 = arith.constant 0 : index
    %0 = vector.load %arg2[%c0, %c0_0] : memref<8x32xf32, #tpu.memory_space<vmem>>, vector<8x32xf32>
    %c0_1 = arith.constant 0 : index
    %c0_2 = arith.constant 0 : index
    %1 = vector.load %arg3[%c0_1, %c0_2] : memref<32x32xf32, #tpu.memory_space<vmem>>, vector<32x32xf32>
    %c0_3 = arith.constant 0 : index
    %c0_4 = arith.constant 0 : index
    %2 = vector.load %arg4[%c0_3, %c0_4] : memref<32x8xf32, #tpu.memory_space<vmem>>, vector<32x8xf32>
    %cst = arith.constant 0.000000e+00 : f32
    %3 = vector.broadcast %cst : f32 to vector<128x128xf32>
    %c0_5 = arith.constant 0 : index
    %c0_6 = arith.constant 0 : index
    %4 = vector.load %arg6[%c0_5, %c0_6] : memref<128x128xf32, #tpu.memory_space<vmem>>, vector<128x128xf32>
    tpu.vector_store %arg6[%c0_5, %c0_6], %3 {strides = array<i32>} : memref<128x128xf32, #tpu.memory_space<vmem>>, vector<128x128xf32>,
    %c0_i32 = arith.constant 0 : i32
    %c8_i32 = arith.constant 8 : i32
    %5 = arith.addi %c0_i32, %c8_i32 : i32
    %c1_i32 = arith.constant 1 : i32
    scf.for %arg7 = %c0_i32 to %5 step %c1_i32  : i32 {
      %c1_i32_8 = arith.constant 1 : i32
      %6 = arith.muli %arg7, %c1_i32_8 : i32
      %c0_i32_9 = arith.constant 0 : i32
      %7 = arith.addi %c0_i32_9, %6 : i32
      %c8_i32_10 = arith.constant 8 : i32
      %8 = arith.muli %7, %c8_i32_10 : i32
      %9 = tpu.assume_multiple %8, 8 : i32
      %10 = arith.index_cast %9 : i32 to index
      %c0_11 = arith.constant 0 : index
      %c0_12 = arith.constant 0 : index
      %11 = vector.load %arg1[%10, %c0_11, %c0_12] : memref<64x16x24xf32, #tpu.memory_space<vmem>>, vector<8x16x16xf32>
      %12 = vector.extract_strided_slice %11 {offsets = [0, 0, 0], sizes = [1, 16, 16], strides = [1, 1, 1]} : vector<8x16x16xf32> to vector<1x16x16xf32>
      %13 = vector.shape_cast %12 : vector<1x16x16xf32> to vector<16x16xf32>
      %c0_13 = arith.constant 0 : index
      %c0_14 = arith.constant 0 : index
      %14 = vector.load %arg6[%c0_13, %c0_14] : memref<128x128xf32, #tpu.memory_space<vmem>>, vector<16x16xf32>
      tpu.vector_store %arg6[%c0_13, %c0_14], %13 {strides = array<i32>} : memref<128x128xf32, #tpu.memory_space<vmem>>, vector<16x16xf32>,
      %15 = vector.extract_strided_slice %11 {offsets = [1, 0, 0], sizes = [1, 16, 16], strides = [1, 1, 1]} : vector<8x16x16xf32> to vector<1x16x16xf32>
      %16 = vector.shape_cast %15 : vector<1x16x16xf32> to vector<16x16xf32>
      %c16 = arith.constant 16 : index
      %c16_15 = arith.constant 16 : index
      %17 = vector.load %arg6[%c16, %c16_15] : memref<128x128xf32, #tpu.memory_space<vmem>>, vector<16x16xf32>
      tpu.vector_store %arg6[%c16, %c16_15], %16 {strides = array<i32>} : memref<128x128xf32, #tpu.memory_space<vmem>>, vector<16x16xf32>,
      %18 = vector.extract_strided_slice %11 {offsets = [2, 0, 0], sizes = [1, 16, 16], strides = [1, 1, 1]} : vector<8x16x16xf32> to vector<1x16x16xf32>
      %19 = vector.shape_cast %18 : vector<1x16x16xf32> to vector<16x16xf32>
      %c32 = arith.constant 32 : index
      %c32_16 = arith.constant 32 : index
      %20 = vector.load %arg6[%c32, %c32_16] : memref<128x128xf32, #tpu.memory_space<vmem>>, vector<16x16xf32>
      tpu.vector_store %arg6[%c32, %c32_16], %19 {strides = array<i32>} : memref<128x128xf32, #tpu.memory_space<vmem>>, vector<16x16xf32>,
      %21 = vector.extract_strided_slice %11 {offsets = [3, 0, 0], sizes = [1, 16, 16], strides = [1, 1, 1]} : vector<8x16x16xf32> to vector<1x16x16xf32>
      %22 = vector.shape_cast %21 : vector<1x16x16xf32> to vector<16x16xf32>
      %c48 = arith.constant 48 : index
      %c48_17 = arith.constant 48 : index
      %23 = vector.load %arg6[%c48, %c48_17] : memref<128x128xf32, #tpu.memory_space<vmem>>, vector<16x16xf32>
      tpu.vector_store %arg6[%c48, %c48_17], %22 {strides = array<i32>} : memref<128x128xf32, #tpu.memory_space<vmem>>, vector<16x16xf32>,
      %24 = vector.extract_strided_slice %11 {offsets = [4, 0, 0], sizes = [1, 16, 16], strides = [1, 1, 1]} : vector<8x16x16xf32> to vector<1x16x16xf32>
      %25 = vector.shape_cast %24 : vector<1x16x16xf32> to vector<16x16xf32>
      %c64 = arith.constant 64 : index
      %c64_18 = arith.constant 64 : index
      %26 = vector.load %arg6[%c64, %c64_18] : memref<128x128xf32, #tpu.memory_space<vmem>>, vector<16x16xf32>
      tpu.vector_store %arg6[%c64, %c64_18], %25 {strides = array<i32>} : memref<128x128xf32, #tpu.memory_space<vmem>>, vector<16x16xf32>,
      %27 = vector.extract_strided_slice %11 {offsets = [5, 0, 0], sizes = [1, 16, 16], strides = [1, 1, 1]} : vector<8x16x16xf32> to vector<1x16x16xf32>
      %28 = vector.shape_cast %27 : vector<1x16x16xf32> to vector<16x16xf32>
      %c80 = arith.constant 80 : index
      %c80_19 = arith.constant 80 : index
      %29 = vector.load %arg6[%c80, %c80_19] : memref<128x128xf32, #tpu.memory_space<vmem>>, vector<16x16xf32>
      tpu.vector_store %arg6[%c80, %c80_19], %28 {strides = array<i32>} : memref<128x128xf32, #tpu.memory_space<vmem>>, vector<16x16xf32>,
      %30 = vector.extract_strided_slice %11 {offsets = [6, 0, 0], sizes = [1, 16, 16], strides = [1, 1, 1]} : vector<8x16x16xf32> to vector<1x16x16xf32>
      %31 = vector.shape_cast %30 : vector<1x16x16xf32> to vector<16x16xf32>
      %c96 = arith.constant 96 : index
      %c96_20 = arith.constant 96 : index
      %32 = vector.load %arg6[%c96, %c96_20] : memref<128x128xf32, #tpu.memory_space<vmem>>, vector<16x16xf32>
      tpu.vector_store %arg6[%c96, %c96_20], %31 {strides = array<i32>} : memref<128x128xf32, #tpu.memory_space<vmem>>, vector<16x16xf32>,
      %33 = vector.extract_strided_slice %11 {offsets = [7, 0, 0], sizes = [1, 16, 16], strides = [1, 1, 1]} : vector<8x16x16xf32> to vector<1x16x16xf32>
      %34 = vector.shape_cast %33 : vector<1x16x16xf32> to vector<16x16xf32>
      %c112 = arith.constant 112 : index
      %c112_21 = arith.constant 112 : index
      %35 = vector.load %arg6[%c112, %c112_21] : memref<128x128xf32, #tpu.memory_space<vmem>>, vector<16x16xf32>
      tpu.vector_store %arg6[%c112, %c112_21], %34 {strides = array<i32>} : memref<128x128xf32, #tpu.memory_space<vmem>>, vector<16x16xf32>,
      %c0_22 = arith.constant 0 : index
      %c0_23 = arith.constant 0 : index
      %36 = vector.load %arg6[%c0_22, %c0_23] : memref<128x128xf32, #tpu.memory_space<vmem>>, vector<128x128xf32>
      %37 = arith.index_cast %9 : i32 to index
      %c0_24 = arith.constant 0 : index
      %c16_25 = arith.constant 16 : index
      %38 = vector.load %arg1[%37, %c0_24, %c16_25] : memref<64x16x24xf32, #tpu.memory_space<vmem>>, vector<8x16x8xf32>
      %39 = vector.shape_cast %38 : vector<8x16x8xf32> to vector<128x8xf32>
      %cst_26 = arith.constant dense<0.000000e+00> : vector<128x32xf32>
      %40 = tpu.matmul %39, %0, %cst_26 {dimension_numbers = #tpu.dot_dimension_numbers<[1], [0], [0], [1], [0, 0, 1, 1], [], []>} : vector<128x8xf32>, vector<8x32xf32>, vector<128x32xf32> -> vector<128x32xf32>
      %cst_27 = arith.constant dense<0.000000e+00> : vector<128x32xf32>
      %41 = tpu.matmul %36, %40, %cst_27 {dimension_numbers = #tpu.dot_dimension_numbers<[1], [0], [0], [1], [0, 0, 1, 1], [], []>} : vector<128x128xf32>, vector<128x32xf32>, vector<128x32xf32> -> vector<128x32xf32>
      %cst_28 = arith.constant 0.000000e+00 : f32
      %42 = vector.broadcast %cst_28 : f32 to vector<128x32xf32>
      %43 = arith.maximumf %41, %42 : vector<128x32xf32>
      %cst_29 = arith.constant dense<0.000000e+00> : vector<128x32xf32>
      %44 = tpu.matmul %43, %1, %cst_29 {dimension_numbers = #tpu.dot_dimension_numbers<[1], [0], [0], [1], [0, 0, 1, 1], [], []>} : vector<128x32xf32>, vector<32x32xf32>, vector<128x32xf32> -> vector<128x32xf32>
      %cst_30 = arith.constant dense<0.000000e+00> : vector<128x32xf32>
      %45 = tpu.matmul %36, %44, %cst_30 {dimension_numbers = #tpu.dot_dimension_numbers<[1], [0], [0], [1], [0, 0, 1, 1], [], []>} : vector<128x128xf32>, vector<128x32xf32>, vector<128x32xf32> -> vector<128x32xf32>
      %cst_31 = arith.constant 0.000000e+00 : f32
      %46 = vector.broadcast %cst_31 : f32 to vector<128x32xf32>
      %47 = arith.maximumf %45, %46 : vector<128x32xf32>
      %cst_32 = arith.constant dense<0.000000e+00> : vector<128x8xf32>
      %48 = tpu.matmul %47, %2, %cst_32 {dimension_numbers = #tpu.dot_dimension_numbers<[1], [0], [0], [1], [0, 0, 1, 1], [], []>} : vector<128x32xf32>, vector<32x8xf32>, vector<128x8xf32> -> vector<128x8xf32>
      %cst_33 = arith.constant dense<0.000000e+00> : vector<128x8xf32>
      %49 = tpu.matmul %36, %48, %cst_33 {dimension_numbers = #tpu.dot_dimension_numbers<[1], [0], [0], [1], [0, 0, 1, 1], [], []>} : vector<128x128xf32>, vector<128x8xf32>, vector<128x8xf32> -> vector<128x8xf32>
      %cst_34 = arith.constant 0.000000e+00 : f32
      %50 = vector.broadcast %cst_34 : f32 to vector<128x8xf32>
      %51 = arith.maximumf %49, %50 : vector<128x8xf32>
      %52 = vector.shape_cast %51 : vector<128x8xf32> to vector<8x16x8xf32>
      %53 = vector.extract_strided_slice %52 {offsets = [0, 0, 0], sizes = [8, 1, 8], strides = [1, 1, 1]} : vector<8x16x8xf32> to vector<8x1x8xf32>
      %54 = vector.shape_cast %53 : vector<8x1x8xf32> to vector<8x8xf32>
      %55 = arith.index_cast %9 : i32 to index
      %c0_35 = arith.constant 0 : index
      %56 = vector.load %arg5[%55, %c0_35] : memref<64x128xf32, #tpu.memory_space<vmem>>, vector<8x8xf32>
      tpu.vector_store %arg5[%55, %c0_35], %54 {strides = array<i32>} : memref<64x128xf32, #tpu.memory_space<vmem>>, vector<8x8xf32>,
      %57 = vector.extract_strided_slice %52 {offsets = [0, 1, 0], sizes = [8, 1, 8], strides = [1, 1, 1]} : vector<8x16x8xf32> to vector<8x1x8xf32>
      %58 = vector.shape_cast %57 : vector<8x1x8xf32> to vector<8x8xf32>
      %59 = arith.index_cast %9 : i32 to index
      %c8 = arith.constant 8 : index
      %60 = vector.load %arg5[%59, %c8] : memref<64x128xf32, #tpu.memory_space<vmem>>, vector<8x8xf32>
      tpu.vector_store %arg5[%59, %c8], %58 {strides = array<i32>} : memref<64x128xf32, #tpu.memory_space<vmem>>, vector<8x8xf32>,
      %61 = vector.extract_strided_slice %52 {offsets = [0, 2, 0], sizes = [8, 1, 8], strides = [1, 1, 1]} : vector<8x16x8xf32> to vector<8x1x8xf32>
      %62 = vector.shape_cast %61 : vector<8x1x8xf32> to vector<8x8xf32>
      %63 = arith.index_cast %9 : i32 to index
      %c16_36 = arith.constant 16 : index
      %64 = vector.load %arg5[%63, %c16_36] : memref<64x128xf32, #tpu.memory_space<vmem>>, vector<8x8xf32>
      tpu.vector_store %arg5[%63, %c16_36], %62 {strides = array<i32>} : memref<64x128xf32, #tpu.memory_space<vmem>>, vector<8x8xf32>,
      %65 = vector.extract_strided_slice %52 {offsets = [0, 3, 0], sizes = [8, 1, 8], strides = [1, 1, 1]} : vector<8x16x8xf32> to vector<8x1x8xf32>
      %66 = vector.shape_cast %65 : vector<8x1x8xf32> to vector<8x8xf32>
      %67 = arith.index_cast %9 : i32 to index
      %c24 = arith.constant 24 : index
      %68 = vector.load %arg5[%67, %c24] : memref<64x128xf32, #tpu.memory_space<vmem>>, vector<8x8xf32>
      tpu.vector_store %arg5[%67, %c24], %66 {strides = array<i32>} : memref<64x128xf32, #tpu.memory_space<vmem>>, vector<8x8xf32>,
      %69 = vector.extract_strided_slice %52 {offsets = [0, 4, 0], sizes = [8, 1, 8], strides = [1, 1, 1]} : vector<8x16x8xf32> to vector<8x1x8xf32>
      %70 = vector.shape_cast %69 : vector<8x1x8xf32> to vector<8x8xf32>
      %71 = arith.index_cast %9 : i32 to index
      %c32_37 = arith.constant 32 : index
      %72 = vector.load %arg5[%71, %c32_37] : memref<64x128xf32, #tpu.memory_space<vmem>>, vector<8x8xf32>
      tpu.vector_store %arg5[%71, %c32_37], %70 {strides = array<i32>} : memref<64x128xf32, #tpu.memory_space<vmem>>, vector<8x8xf32>,
      %73 = vector.extract_strided_slice %52 {offsets = [0, 5, 0], sizes = [8, 1, 8], strides = [1, 1, 1]} : vector<8x16x8xf32> to vector<8x1x8xf32>
      %74 = vector.shape_cast %73 : vector<8x1x8xf32> to vector<8x8xf32>
      %75 = arith.index_cast %9 : i32 to index
      %c40 = arith.constant 40 : index
      %76 = vector.load %arg5[%75, %c40] : memref<64x128xf32, #tpu.memory_space<vmem>>, vector<8x8xf32>
      tpu.vector_store %arg5[%75, %c40], %74 {strides = array<i32>} : memref<64x128xf32, #tpu.memory_space<vmem>>, vector<8x8xf32>,
      %77 = vector.extract_strided_slice %52 {offsets = [0, 6, 0], sizes = [8, 1, 8], strides = [1, 1, 1]} : vector<8x16x8xf32> to vector<8x1x8xf32>
      %78 = vector.shape_cast %77 : vector<8x1x8xf32> to vector<8x8xf32>
      %79 = arith.index_cast %9 : i32 to index
      %c48_38 = arith.constant 48 : index
      %80 = vector.load %arg5[%79, %c48_38] : memref<64x128xf32, #tpu.memory_space<vmem>>, vector<8x8xf32>
      tpu.vector_store %arg5[%79, %c48_38], %78 {strides = array<i32>} : memref<64x128xf32, #tpu.memory_space<vmem>>, vector<8x8xf32>,
      %81 = vector.extract_strided_slice %52 {offsets = [0, 7, 0], sizes = [8, 1, 8], strides = [1, 1, 1]} : vector<8x16x8xf32> to vector<8x1x8xf32>
      %82 = vector.shape_cast %81 : vector<8x1x8xf32> to vector<8x8xf32>
      %83 = arith.index_cast %9 : i32 to index
      %c56 = arith.constant 56 : index
      %84 = vector.load %arg5[%83, %c56] : memref<64x128xf32, #tpu.memory_space<vmem>>, vector<8x8xf32>
      tpu.vector_store %arg5[%83, %c56], %82 {strides = array<i32>} : memref<64x128xf32, #tpu.memory_space<vmem>>, vector<8x8xf32>,
      %85 = vector.extract_strided_slice %52 {offsets = [0, 8, 0], sizes = [8, 1, 8], strides = [1, 1, 1]} : vector<8x16x8xf32> to vector<8x1x8xf32>
      %86 = vector.shape_cast %85 : vector<8x1x8xf32> to vector<8x8xf32>
      %87 = arith.index_cast %9 : i32 to index
      %c64_39 = arith.constant 64 : index
      %88 = vector.load %arg5[%87, %c64_39] : memref<64x128xf32, #tpu.memory_space<vmem>>, vector<8x8xf32>
      tpu.vector_store %arg5[%87, %c64_39], %86 {strides = array<i32>} : memref<64x128xf32, #tpu.memory_space<vmem>>, vector<8x8xf32>,
      %89 = vector.extract_strided_slice %52 {offsets = [0, 9, 0], sizes = [8, 1, 8], strides = [1, 1, 1]} : vector<8x16x8xf32> to vector<8x1x8xf32>
      %90 = vector.shape_cast %89 : vector<8x1x8xf32> to vector<8x8xf32>
      %91 = arith.index_cast %9 : i32 to index
      %c72 = arith.constant 72 : index
      %92 = vector.load %arg5[%91, %c72] : memref<64x128xf32, #tpu.memory_space<vmem>>, vector<8x8xf32>
      tpu.vector_store %arg5[%91, %c72], %90 {strides = array<i32>} : memref<64x128xf32, #tpu.memory_space<vmem>>, vector<8x8xf32>,
      %93 = vector.extract_strided_slice %52 {offsets = [0, 10, 0], sizes = [8, 1, 8], strides = [1, 1, 1]} : vector<8x16x8xf32> to vector<8x1x8xf32>
      %94 = vector.shape_cast %93 : vector<8x1x8xf32> to vector<8x8xf32>
      %95 = arith.index_cast %9 : i32 to index
      %c80_40 = arith.constant 80 : index
      %96 = vector.load %arg5[%95, %c80_40] : memref<64x128xf32, #tpu.memory_space<vmem>>, vector<8x8xf32>
      tpu.vector_store %arg5[%95, %c80_40], %94 {strides = array<i32>} : memref<64x128xf32, #tpu.memory_space<vmem>>, vector<8x8xf32>,
      %97 = vector.extract_strided_slice %52 {offsets = [0, 11, 0], sizes = [8, 1, 8], strides = [1, 1, 1]} : vector<8x16x8xf32> to vector<8x1x8xf32>
      %98 = vector.shape_cast %97 : vector<8x1x8xf32> to vector<8x8xf32>
      %99 = arith.index_cast %9 : i32 to index
      %c88 = arith.constant 88 : index
      %100 = vector.load %arg5[%99, %c88] : memref<64x128xf32, #tpu.memory_space<vmem>>, vector<8x8xf32>
      tpu.vector_store %arg5[%99, %c88], %98 {strides = array<i32>} : memref<64x128xf32, #tpu.memory_space<vmem>>, vector<8x8xf32>,
      %101 = vector.extract_strided_slice %52 {offsets = [0, 12, 0], sizes = [8, 1, 8], strides = [1, 1, 1]} : vector<8x16x8xf32> to vector<8x1x8xf32>
      %102 = vector.shape_cast %101 : vector<8x1x8xf32> to vector<8x8xf32>
      %103 = arith.index_cast %9 : i32 to index
      %c96_41 = arith.constant 96 : index
      %104 = vector.load %arg5[%103, %c96_41] : memref<64x128xf32, #tpu.memory_space<vmem>>, vector<8x8xf32>
      tpu.vector_store %arg5[%103, %c96_41], %102 {strides = array<i32>} : memref<64x128xf32, #tpu.memory_space<vmem>>, vector<8x8xf32>,
      %105 = vector.extract_strided_slice %52 {offsets = [0, 13, 0], sizes = [8, 1, 8], strides = [1, 1, 1]} : vector<8x16x8xf32> to vector<8x1x8xf32>
      %106 = vector.shape_cast %105 : vector<8x1x8xf32> to vector<8x8xf32>
      %107 = arith.index_cast %9 : i32 to index
      %c104 = arith.constant 104 : index
      %108 = vector.load %arg5[%107, %c104] : memref<64x128xf32, #tpu.memory_space<vmem>>, vector<8x8xf32>
      tpu.vector_store %arg5[%107, %c104], %106 {strides = array<i32>} : memref<64x128xf32, #tpu.memory_space<vmem>>, vector<8x8xf32>,
      %109 = vector.extract_strided_slice %52 {offsets = [0, 14, 0], sizes = [8, 1, 8], strides = [1, 1, 1]} : vector<8x16x8xf32> to vector<8x1x8xf32>
      %110 = vector.shape_cast %109 : vector<8x1x8xf32> to vector<8x8xf32>
      %111 = arith.index_cast %9 : i32 to index
      %c112_42 = arith.constant 112 : index
      %112 = vector.load %arg5[%111, %c112_42] : memref<64x128xf32, #tpu.memory_space<vmem>>, vector<8x8xf32>
      tpu.vector_store %arg5[%111, %c112_42], %110 {strides = array<i32>} : memref<64x128xf32, #tpu.memory_space<vmem>>, vector<8x8xf32>,
      %113 = vector.extract_strided_slice %52 {offsets = [0, 15, 0], sizes = [8, 1, 8], strides = [1, 1, 1]} : vector<8x16x8xf32> to vector<8x1x8xf32>
      %114 = vector.shape_cast %113 : vector<8x1x8xf32> to vector<8x8xf32>
      %115 = arith.index_cast %9 : i32 to index
      %c120 = arith.constant 120 : index
      %116 = vector.load %arg5[%115, %c120] : memref<64x128xf32, #tpu.memory_space<vmem>>, vector<8x8xf32>
      tpu.vector_store %arg5[%115, %c120], %114 {strides = array<i32>} : memref<64x128xf32, #tpu.memory_space<vmem>>, vector<8x8xf32>,
    }
    %c8_i32_7 = arith.constant 8 : i32
    return
  }
  func.func @transform_0(%arg0: i32) -> (i32, i32, i32) {
    %c0_i32 = arith.constant 0 : i32
    %c0_i32_0 = arith.constant 0 : i32
    %c0_i32_1 = arith.constant 0 : i32
    return %arg0, %c0_i32, %c0_i32_0 : i32, i32, i32
  }
  func.func @transform_1(%arg0: i32) -> (i32, i32) {
    %c0_i32 = arith.constant 0 : i32
    %c0_i32_0 = arith.constant 0 : i32
    %c0_i32_1 = arith.constant 0 : i32
    return %c0_i32, %c0_i32_0 : i32, i32
  }
  func.func @transform_2(%arg0: i32) -> (i32, i32) {
    %c0_i32 = arith.constant 0 : i32
    %c0_i32_0 = arith.constant 0 : i32
    %c0_i32_1 = arith.constant 0 : i32
    return %c0_i32, %c0_i32_0 : i32, i32
  }
  func.func @transform_3(%arg0: i32) -> (i32, i32) {
    %c0_i32 = arith.constant 0 : i32
    %c0_i32_0 = arith.constant 0 : i32
    %c0_i32_1 = arith.constant 0 : i32
    return %c0_i32, %c0_i32_0 : i32, i32
  }
  func.func @transform_4(%arg0: i32) -> (i32, i32) {
    %c0_i32 = arith.constant 0 : i32
    %c0_i32_0 = arith.constant 0 : i32
    return %arg0, %c0_i32 : i32, i32
  }
}

</mosaic_0001>

<llo_original>
// kernel: gnn_forward.1
$region0: #{gnn_forward.1}
  #allocation0 [shape = 'u32[]', space=smem, size = 0x4, offset = 0x4, fixed_abs, tag = 'smem constant byte address 0x4 - core index']
  #allocation1 [shape = 'u32[144,128]{1,0:T(1,128)}', space=vmem, size = 0x12000, scoped, tag = 'internal scratch']
  #allocation2 [shape = 'f32[128,128]{1,0:T(8,128)}', space=vmem, size = 0x10000, scoped, tag = 'scratch operand']
  %s0 = inlined_call_operand.vmem [shape: f32[64,16,24], index: 0, kind: input, shape index: {}]
  %s1 = inlined_call_operand.vmem [shape: f32[8,32], index: 1, kind: input, shape index: {}]
  %s2 = inlined_call_operand.vmem [shape: f32[32,32], index: 2, kind: input, shape index: {}]
  %s3 = inlined_call_operand.vmem [shape: f32[32,8], index: 3, kind: input, shape index: {}]
  %s4 = inlined_call_operand.hbm [shape: f32[64,128], index: 4, kind: output, shape index: {}]
  %s5 = sld [smem:[#allocation0]]
  $region33: #{gnn_forward.1} parent=0
    _
  %s7 = ssub.s32 1, %s5
  %s8 = scalar_select 0, %s7, %s5
  $region1: #{gnn_forward.1} parent=0
    #allocation3 [shape = 'u8[32768]{0}', space=vmem, size = 0x8000, scoped, tag = 'output window, operand 0, single buffered']
    #allocation4 [shape = 's32[1]{0}', space=sflag, size = 0x4, scoped, tag = 'scoped memory for gnn_forward.1']
    %9 = vsyncpa [#allocation4], 0
    // Predicated region
    $region2: #{gnn_forward.1} parent=1 // pred_check
      _
    $region3: #{gnn_forward.1} parent=1 // pred_check_branch
      %11 = sbr.rel (0) target = $region5
    $region4: #{gnn_forward.1} parent=1 // pred_region
      _
    $region5: #{gnn_forward.1} parent=1 // pred_fallthru
      _
    // Predicated region
    $region6: #{gnn_forward.1} parent=1 // pred_check
      _
    $region7: #{gnn_forward.1} parent=1 // pred_check_branch
      %13 = sbr.rel (0) target = $region9
    $region8: #{gnn_forward.1} parent=1 // pred_region
      _
    $region9: #{gnn_forward.1} parent=1 // pred_fallthru
      _
    // Predicated region
    $region10: #{gnn_forward.1} parent=1 // pred_check
      _
    $region11: #{gnn_forward.1} parent=1 // pred_check_branch
      %15 = sbr.rel (0) target = $region13
    $region12: #{gnn_forward.1} parent=1 // pred_region
      _
    $region13: #{gnn_forward.1} parent=1 // pred_fallthru
      _
    // Predicated region
    $region14: #{gnn_forward.1} parent=1 // pred_check
      _
    $region15: #{gnn_forward.1} parent=1 // pred_check_branch
      %17 = sbr.rel (0) target = $region17
    $region16: #{gnn_forward.1} parent=1 // pred_region
      _
    $region17: #{gnn_forward.1} parent=1 // pred_fallthru
      _
    %v18 = vld [vmem:[%s1] sm:$0xff]
    %v19 = vld [vmem:[%s2] sm:$0xff]
    %v20 = vld [vmem:[%s2 + $0x8] sm:$0xff]
    %v21 = vld [vmem:[%s2 + $0x10] sm:$0xff]
    %v22 = vld [vmem:[%s2 + $0x18] sm:$0xff]
    %v23 = vld [vmem:[%s3] sm:$0xff]
    %v24 = vld [vmem:[%s3 + $0x8] sm:$0xff]
    %v25 = vld [vmem:[%s3 + $0x10] sm:$0xff]
    %v26 = vld [vmem:[%s3 + $0x18] sm:$0xff]
    %27 = vst [vmem:[#allocation2] sm:$0xff] 0.0
    %28 = vst [vmem:[#allocation2 + $0x8] sm:$0xff] 0.0
    %29 = vst [vmem:[#allocation2 + $0x10] sm:$0xff] 0.0
    %30 = vst [vmem:[#allocation2 + $0x18] sm:$0xff] 0.0
    %31 = vst [vmem:[#allocation2 + $0x20] sm:$0xff] 0.0
    %32 = vst [vmem:[#allocation2 + $0x28] sm:$0xff] 0.0
    %33 = vst [vmem:[#allocation2 + $0x30] sm:$0xff] 0.0
    %34 = vst [vmem:[#allocation2 + $0x38] sm:$0xff] 0.0
    %35 = vst [vmem:[#allocation2 + $0x40] sm:$0xff] 0.0
    %36 = vst [vmem:[#allocation2 + $0x48] sm:$0xff] 0.0
    %37 = vst [vmem:[#allocation2 + $0x50] sm:$0xff] 0.0
    %38 = vst [vmem:[#allocation2 + $0x58] sm:$0xff] 0.0
    %39 = vst [vmem:[#allocation2 + $0x60] sm:$0xff] 0.0
    %40 = vst [vmem:[#allocation2 + $0x68] sm:$0xff] 0.0
    %41 = vst [vmem:[#allocation2 + $0x70] sm:$0xff] 0.0
    %42 = vst [vmem:[#allocation2 + $0x78] sm:$0xff] 0.0
    loop: start=0, step=1, limit=8
    $region18: #{gnn_forward.1} parent=1 // loop_pre_header
      _
    $region19: #{gnn_forward.1} parent=1 // loop_header
      %s44 = sphi 0, %s48
      %p45 = scmp.ge.s32.totalorder %s44, 8
    $region20: #{gnn_forward.1} parent=1 // loop_header_branch
      %47 = sbr.rel (%p45) target = $region24
    $region21: #{gnn_forward.1} parent=1 // loop_body
      %s49 = smul.u32 %s44, 8
      %s50 = smul.u32 %s49, 16
      %s51 = scalar_lea.vmem %s0, %s50
      %v52 = vld [vmem:[%s51] sm:$0xff]
      %v53 = vld [vmem:[%s51 + $0x8] sm:$0xff]
      %v54 = vld [vmem:[%s51 + $0x10] sm:$0xff]
      %v55 = vld [vmem:[%s51 + $0x18] sm:$0xff]
      %v56 = vld [vmem:[%s51 + $0x20] sm:$0xff]
      %v57 = vld [vmem:[%s51 + $0x28] sm:$0xff]
      %v58 = vld [vmem:[%s51 + $0x30] sm:$0xff]
      %v59 = vld [vmem:[%s51 + $0x38] sm:$0xff]
      %v60 = vld [vmem:[%s51 + $0x40] sm:$0xff]
      %v61 = vld [vmem:[%s51 + $0x48] sm:$0xff]
      %v62 = vld [vmem:[%s51 + $0x50] sm:$0xff]
      %v63 = vld [vmem:[%s51 + $0x58] sm:$0xff]
      %v64 = vld [vmem:[%s51 + $0x60] sm:$0xff]
      %v65 = vld [vmem:[%s51 + $0x68] sm:$0xff]
      %v66 = vld [vmem:[%s51 + $0x70] sm:$0xff]
      %v67 = vld [vmem:[%s51 + $0x78] sm:$0xff]
      %vm68 = vcmask 130048
      %69 = vst.msk [vmem:[#allocation2] sm:$0xff] %vm68, %v52
      %70 = vst.msk [vmem:[#allocation2 + $0x8] sm:$0xff] %vm68, %v53
      %73 = vrot.lane.b32.xlu0 %v54, 16
      %v74 = vpop.permute.xlu0 %73
      %75 = vrot.lane.b32.xlu0 %v55, 16
      %v76 = vpop.permute.xlu0 %75
      %vm79 = vcmask 261248
      %80 = vst.msk [vmem:[#allocation2 + $0x10] sm:$0xff] %vm79, %v74
      %81 = vst.msk [vmem:[#allocation2 + $0x18] sm:$0xff] %vm79, %v76
      %84 = vrot.lane.b32.xlu0 %v56, 32
      %v85 = vpop.permute.xlu0 %84
      %86 = vrot.lane.b32.xlu0 %v57, 32
      %v87 = vpop.permute.xlu0 %86
      %vm90 = vcmask 392448
      %91 = vst.msk [vmem:[#allocation2 + $0x20] sm:$0xff] %vm90, %v85
      %92 = vst.msk [vmem:[#allocation2 + $0x28] sm:$0xff] %vm90, %v87
      %95 = vrot.lane.b32.xlu0 %v58, 48
      %v96 = vpop.permute.xlu0 %95
      %97 = vrot.lane.b32.xlu0 %v59, 48
      %v98 = vpop.permute.xlu0 %97
      %vm101 = vcmask 523648
      %102 = vst.msk [vmem:[#allocation2 + $0x30] sm:$0xff] %vm101, %v96
      %103 = vst.msk [vmem:[#allocation2 + $0x38] sm:$0xff] %vm101, %v98
      %106 = vrot.lane.b32.xlu0 %v60, 64
      %v107 = vpop.permute.xlu0 %106
      %108 = vrot.lane.b32.xlu0 %v61, 64
      %v109 = vpop.permute.xlu0 %108
      %vm112 = vcmask 654848
      %113 = vst.msk [vmem:[#allocation2 + $0x40] sm:$0xff] %vm112, %v107
      %114 = vst.msk [vmem:[#allocation2 + $0x48] sm:$0xff] %vm112, %v109
      %117 = vrot.lane.b32.xlu0 %v62, 80
      %v118 = vpop.permute.xlu0 %117
      %119 = vrot.lane.b32.xlu0 %v63, 80
      %v120 = vpop.permute.xlu0 %119
      %vm123 = vcmask 786048
      %124 = vst.msk [vmem:[#allocation2 + $0x50] sm:$0xff] %vm123, %v118
      %125 = vst.msk [vmem:[#allocation2 + $0x58] sm:$0xff] %vm123, %v120
      %128 = vrot.lane.b32.xlu0 %v64, 96
      %v129 = vpop.permute.xlu0 %128
      %130 = vrot.lane.b32.xlu0 %v65, 96
      %v131 = vpop.permute.xlu0 %130
      %vm134 = vcmask 917248
      %135 = vst.msk [vmem:[#allocation2 + $0x60] sm:$0xff] %vm134, %v129
      %136 = vst.msk [vmem:[#allocation2 + $0x68] sm:$0xff] %vm134, %v131
      %139 = vrot.lane.b32.xlu0 %v66, 112
      %v140 = vpop.permute.xlu0 %139
      %141 = vrot.lane.b32.xlu0 %v67, 112
      %v142 = vpop.permute.xlu0 %141
      %vm145 = vcmask 1048448
      %146 = vst.msk [vmem:[#allocation2 + $0x70] sm:$0xff] %vm145, %v140
      %147 = vst.msk [vmem:[#allocation2 + $0x78] sm:$0xff] %vm145, %v142
      %v148 = vld [vmem:[#allocation2] sm:$0xff]
      %v149 = vld [vmem:[#allocation2 + $0x8] sm:$0xff]
      %v150 = vld [vmem:[#allocation2 + $0x10] sm:$0xff]
      %v151 = vld [vmem:[#allocation2 + $0x18] sm:$0xff]
      %v152 = vld [vmem:[#allocation2 + $0x20] sm:$0xff]
      %v153 = vld [vmem:[#allocation2 + $0x28] sm:$0xff]
      %v154 = vld [vmem:[#allocation2 + $0x30] sm:$0xff]
      %v155 = vld [vmem:[#allocation2 + $0x38] sm:$0xff]
      %v156 = vld [vmem:[#allocation2 + $0x40] sm:$0xff]
      %v157 = vld [vmem:[#allocation2 + $0x48] sm:$0xff]
      %v158 = vld [vmem:[#allocation2 + $0x50] sm:$0xff]
      %v159 = vld [vmem:[#allocation2 + $0x58] sm:$0xff]
      %v160 = vld [vmem:[#allocation2 + $0x60] sm:$0xff]
      %v161 = vld [vmem:[#allocation2 + $0x68] sm:$0xff]
      %v162 = vld [vmem:[#allocation2 + $0x70] sm:$0xff]
      %v163 = vld [vmem:[#allocation2 + $0x78] sm:$0xff]
      %v164 = vld [vmem:[%s51] sm:$0xff]
      %v165 = vld [vmem:[%s51 + $0x8] sm:$0xff]
      %v166 = vld [vmem:[%s51 + $0x10] sm:$0xff]
      %v167 = vld [vmem:[%s51 + $0x18] sm:$0xff]
      %v168 = vld [vmem:[%s51 + $0x20] sm:$0xff]
      %v169 = vld [vmem:[%s51 + $0x28] sm:$0xff]
      %v170 = vld [vmem:[%s51 + $0x30] sm:$0xff]
      %v171 = vld [vmem:[%s51 + $0x38] sm:$0xff]
      %v172 = vld [vmem:[%s51 + $0x40] sm:$0xff]
      %v173 = vld [vmem:[%s51 + $0x48] sm:$0xff]
      %v174 = vld [vmem:[%s51 + $0x50] sm:$0xff]
      %v175 = vld [vmem:[%s51 + $0x58] sm:$0xff]
      %v176 = vld [vmem:[%s51 + $0x60] sm:$0xff]
      %v177 = vld [vmem:[%s51 + $0x68] sm:$0xff]
      %v178 = vld [vmem:[%s51 + $0x70] sm:$0xff]
      %v179 = vld [vmem:[%s51 + $0x78] sm:$0xff]
      %196 = vrot.lane.b32.xlu0 %v164, 112
      %v197 = vpop.permute.xlu0 %196
      %198 = vrot.lane.b32.xlu0 %v165, 112
      %v199 = vpop.permute.xlu0 %198
      %200 = vrot.lane.b32.xlu0 %v166, 112
      %v201 = vpop.permute.xlu0 %200
      %202 = vrot.lane.b32.xlu0 %v167, 112
      %v203 = vpop.permute.xlu0 %202
      %204 = vrot.lane.b32.xlu0 %v168, 112
      %v205 = vpop.permute.xlu0 %204
      %206 = vrot.lane.b32.xlu0 %v169, 112
      %v207 = vpop.permute.xlu0 %206
      %208 = vrot.lane.b32.xlu0 %v170, 112
      %v209 = vpop.permute.xlu0 %208
      %210 = vrot.lane.b32.xlu0 %v171, 112
      %v211 = vpop.permute.xlu0 %210
      %212 = vrot.lane.b32.xlu0 %v172, 112
      %v213 = vpop.permute.xlu0 %212
      %214 = vrot.lane.b32.xlu0 %v173, 112
      %v215 = vpop.permute.xlu0 %214
      %216 = vrot.lane.b32.xlu0 %v174, 112
      %v217 = vpop.permute.xlu0 %216
      %218 = vrot.lane.b32.xlu0 %v175, 112
      %v219 = vpop.permute.xlu0 %218
      %220 = vrot.lane.b32.xlu0 %v176, 112
      %v221 = vpop.permute.xlu0 %220
      %222 = vrot.lane.b32.xlu0 %v177, 112
      %v223 = vpop.permute.xlu0 %222
      %224 = vrot.lane.b32.xlu0 %v178, 112
      %v225 = vpop.permute.xlu0 %224
      %226 = vrot.lane.b32.xlu0 %v179, 112
      %v227 = vpop.permute.xlu0 %226
      %vm228 = vcmask 64512
      %v229 = vsel %vm228, %v197, 0
      %v231 = vsel %vm228, %v199, 0
      %v233 = vsel %vm228, %v201, 0
      %v235 = vsel %vm228, %v203, 0
      %v237 = vsel %vm228, %v205, 0
      %v239 = vsel %vm228, %v207, 0
      %v241 = vsel %vm228, %v209, 0
      %v243 = vsel %vm228, %v211, 0
      %v245 = vsel %vm228, %v213, 0
      %v247 = vsel %vm228, %v215, 0
      %v249 = vsel %vm228, %v217, 0
      %v251 = vsel %vm228, %v219, 0
      %v253 = vsel %vm228, %v221, 0
      %v255 = vsel %vm228, %v223, 0
      %v257 = vsel %vm228, %v225, 0
      %v259 = vsel %vm228, %v227, 0
      %261 = vmatprep.subr.mxu0 0.0
      %262 = vmatpush1.msra.mxu0 %v18
      %263 = vmatprep.subr.mxu0 0.0
      %264 = vmatpush1.msra.mxu0 0.0
      %265 = vmatprep.subr.mxu0 0.0
      %266 = vmatpush1.msra.mxu0 0.0
      %267 = vmatprep.subr.mxu0 0.0
      %268 = vmatpush1.msra.mxu0 0.0
      %269 = vmatprep.subr.mxu0 0.0
      %270 = vmatpush1.msra.mxu0 0.0
      %271 = vmatprep.subr.mxu0 0.0
      %272 = vmatpush1.msra.mxu0 0.0
      %273 = vmatprep.subr.mxu0 0.0
      %274 = vmatpush1.msra.mxu0 0.0
      %275 = vmatprep.subr.mxu0 0.0
      %276 = vmatpush1.msra.mxu0 0.0
      %277 = vmatprep.subr.mxu0 0.0
      %278 = vmatpush1.msra.mxu0 0.0
      %279 = vmatprep.subr.mxu0 0.0
      %280 = vmatpush1.msra.mxu0 0.0
      %281 = vmatprep.subr.mxu0 0.0
      %282 = vmatpush1.msra.mxu0 0.0
      %283 = vmatprep.subr.mxu0 0.0
      %284 = vmatpush1.msra.mxu0 0.0
      %285 = vmatprep.subr.mxu0 0.0
      %286 = vmatpush1.msra.mxu0 0.0
      %287 = vmatprep.subr.mxu0 0.0
      %288 = vmatpush1.msra.mxu0 0.0
      %289 = vmatprep.subr.mxu0 0.0
      %290 = vmatpush1.msra.mxu0 0.0
      %291 = vmatprep.subr.mxu0 0.0
      %292 = vmatpush1.msra.mxu0 0.0
      %293 = vmatprep.subr.mxu0 0.0
      %294 = vmatpush1.msra.mxu0 0.0
      %295 = vmatprep.subr.mxu0 0.0
      %296 = vmatpush1.msra.mxu0 0.0
      %297 = vmatprep.subr.mxu0 0.0
      %298 = vmatpush1.msra.mxu0 0.0
      %299 = vmatprep.subr.mxu0 0.0
      %300 = vmatpush1.msra.mxu0 0.0
      %301 = vmatprep.subr.mxu0 0.0
      %302 = vmatpush1.msra.mxu0 0.0
      %303 = vmatprep.subr.mxu0 0.0
      %304 = vmatpush1.msra.mxu0 0.0
      %305 = vmatprep.subr.mxu0 0.0
      %306 = vmatpush1.msra.mxu0 0.0
      %307 = vmatprep.subr.mxu0 0.0
      %308 = vmatpush1.msra.mxu0 0.0
      %309 = vmatprep.subr.mxu0 0.0
      %310 = vmatpush1.msra.mxu0 0.0
      %311 = vmatprep.subr.mxu0 0.0
      %312 = vmatpush1.msra.mxu0 0.0
      %313 = vmatprep.subr.mxu0 0.0
      %314 = vmatpush1.msra.mxu0 0.0
      %315 = vmatprep.subr.mxu0 0.0
      %316 = vmatpush1.msra.mxu0 0.0
      %317 = vmatprep.subr.mxu0 0.0
      %318 = vmatpush1.msra.mxu0 0.0
      %319 = vmatprep.subr.mxu0 0.0
      %320 = vmatpush1.msra.mxu0 0.0
      %321 = vmatprep.subr.mxu0 0.0
      %322 = vmatpush1.msra.mxu0 0.0
      %323 = vmatprep.subr.mxu0 0.0
      %324 = vmatpush1.msra.mxu0 0.0
      %325 = vmatprep.mubr.f32.mxu0 0.0
      %326 = vmatmul.mubr.f32.gmra.mrb[0].mxu0 %v229
      %v327 = vpop.f32.mrb[0].mxu0
      %v328 = vadd.f32 0.0, %v327
      %v329 = vpop.f32.mrb[0].mxu0
      %330 = vmatprep.mubr.f32.mxu0 0.0
      %331 = vmatmul.mubr.f32.gmra.mrb[0].mxu0 %v231
      %v332 = vpop.f32.mrb[0].mxu0
      %v333 = vadd.f32 0.0, %v332
      %v334 = vpop.f32.mrb[0].mxu0
      %335 = vmatprep.mubr.f32.mxu0 0.0
      %336 = vmatmul.mubr.f32.gmra.mrb[0].mxu0 %v233
      %v337 = vpop.f32.mrb[0].mxu0
      %v338 = vadd.f32 0.0, %v337
      %v339 = vpop.f32.mrb[0].mxu0
      %340 = vmatprep.mubr.f32.mxu0 0.0
      %341 = vmatmul.mubr.f32.gmra.mrb[0].mxu0 %v235
      %v342 = vpop.f32.mrb[0].mxu0
      %v343 = vadd.f32 0.0, %v342
      %v344 = vpop.f32.mrb[0].mxu0
      %345 = vmatprep.mubr.f32.mxu0 0.0
      %346 = vmatmul.mubr.f32.gmra.mrb[0].mxu0 %v237
      %v347 = vpop.f32.mrb[0].mxu0
      %v348 = vadd.f32 0.0, %v347
      %v349 = vpop.f32.mrb[0].mxu0
      %350 = vmatprep.mubr.f32.mxu0 0.0
      %351 = vmatmul.mubr.f32.gmra.mrb[0].mxu0 %v239
      %v352 = vpop.f32.mrb[0].mxu0
      %v353 = vadd.f32 0.0, %v352
      %v354 = vpop.f32.mrb[0].mxu0
      %355 = vmatprep.mubr.f32.mxu0 0.0
      %356 = vmatmul.mubr.f32.gmra.mrb[0].mxu0 %v241
      %v357 = vpop.f32.mrb[0].mxu0
      %v358 = vadd.f32 0.0, %v357
      %v359 = vpop.f32.mrb[0].mxu0
      %360 = vmatprep.mubr.f32.mxu0 0.0
      %361 = vmatmul.mubr.f32.gmra.mrb[0].mxu0 %v243
      %v362 = vpop.f32.mrb[0].mxu0
      %v363 = vadd.f32 0.0, %v362
      %v364 = vpop.f32.mrb[0].mxu0
      %365 = vmatprep.mubr.f32.mxu0 0.0
      %366 = vmatmul.mubr.f32.gmra.mrb[0].mxu0 %v245
      %v367 = vpop.f32.mrb[0].mxu0
      %v368 = vadd.f32 0.0, %v367
      %v369 = vpop.f32.mrb[0].mxu0
      %370 = vmatprep.mubr.f32.mxu0 0.0
      %371 = vmatmul.mubr.f32.gmra.mrb[0].mxu0 %v247
      %v372 = vpop.f32.mrb[0].mxu0
      %v373 = vadd.f32 0.0, %v372
      %v374 = vpop.f32.mrb[0].mxu0
      %375 = vmatprep.mubr.f32.mxu0 0.0
      %376 = vmatmul.mubr.f32.gmra.mrb[0].mxu0 %v249
      %v377 = vpop.f32.mrb[0].mxu0
      %v378 = vadd.f32 0.0, %v377
      %v379 = vpop.f32.mrb[0].mxu0
      %380 = vmatprep.mubr.f32.mxu0 0.0
      %381 = vmatmul.mubr.f32.gmra.mrb[0].mxu0 %v251
      %v382 = vpop.f32.mrb[0].mxu0
      %v383 = vadd.f32 0.0, %v382
      %v384 = vpop.f32.mrb[0].mxu0
      %385 = vmatprep.mubr.f32.mxu0 0.0
      %386 = vmatmul.mubr.f32.gmra.mrb[0].mxu0 %v253
      %v387 = vpop.f32.mrb[0].mxu0
      %v388 = vadd.f32 0.0, %v387
      %v389 = vpop.f32.mrb[0].mxu0
      %390 = vmatprep.mubr.f32.mxu0 0.0
      %391 = vmatmul.mubr.f32.gmra.mrb[0].mxu0 %v255
      %v392 = vpop.f32.mrb[0].mxu0
      %v393 = vadd.f32 0.0, %v392
      %v394 = vpop.f32.mrb[0].mxu0
      %395 = vmatprep.mubr.f32.mxu0 0.0
      %396 = vmatmul.mubr.f32.gmra.mrb[0].mxu0 %v257
      %v397 = vpop.f32.mrb[0].mxu0
      %v398 = vadd.f32 0.0, %v397
      %v399 = vpop.f32.mrb[0].mxu0
      %400 = vmatprep.mubr.f32.mxu0 0.0
      %401 = vmatmul.mubr.f32.gmra.mrb[0].mxu0 %v259
      %v402 = vpop.f32.mrb[0].mxu0
      %v403 = vadd.f32 0.0, %v402
      %v404 = vpop.f32.mrb[0].mxu0
      %405 = vdwg.mxu0
      %406 = vmatprep.subr.mxu0 0.0
      %407 = vmatpush1.msra.mxu0 %v328
      %408 = vmatprep.subr.mxu0 0.0
      %409 = vmatpush1.msra.mxu0 %v333
      %410 = vmatprep.subr.mxu0 0.0
      %411 = vmatpush1.msra.mxu0 %v338
      %412 = vmatprep.subr.mxu0 0.0
      %413 = vmatpush1.msra.mxu0 %v343
      %414 = vmatprep.subr.mxu0 0.0
      %415 = vmatpush1.msra.mxu0 %v348
      %416 = vmatprep.subr.mxu0 0.0
      %417 = vmatpush1.msra.mxu0 %v353
      %418 = vmatprep.subr.mxu0 0.0
      %419 = vmatpush1.msra.mxu0 %v358
      %420 = vmatprep.subr.mxu0 0.0
      %421 = vmatpush1.msra.mxu0 %v363
      %422 = vmatprep.subr.mxu0 0.0
      %423 = vmatpush1.msra.mxu0 %v368
      %424 = vmatprep.subr.mxu0 0.0
      %425 = vmatpush1.msra.mxu0 %v373
      %426 = vmatprep.subr.mxu0 0.0
      %427 = vmatpush1.msra.mxu0 %v378
      %428 = vmatprep.subr.mxu0 0.0
      %429 = vmatpush1.msra.mxu0 %v383
      %430 = vmatprep.subr.mxu0 0.0
      %431 = vmatpush1.msra.mxu0 %v388
      %432 = vmatprep.subr.mxu0 0.0
      %433 = vmatpush1.msra.mxu0 %v393
      %434 = vmatprep.subr.mxu0 0.0
      %435 = vmatpush1.msra.mxu0 %v398
      %436 = vmatprep.subr.mxu0 0.0
      %437 = vmatpush1.msra.mxu0 %v403
      %438 = vmatprep.subr.mxu0 0.0
      %439 = vmatpush1.msra.mxu0 0.0
      %440 = vmatprep.subr.mxu0 0.0
      %441 = vmatpush1.msra.mxu0 0.0
      %442 = vmatprep.subr.mxu0 0.0
      %443 = vmatpush1.msra.mxu0 0.0
      %444 = vmatprep.subr.mxu0 0.0
      %445 = vmatpush1.msra.mxu0 0.0
      %446 = vmatprep.subr.mxu0 0.0
      %447 = vmatpush1.msra.mxu0 0.0
      %448 = vmatprep.subr.mxu0 0.0
      %449 = vmatpush1.msra.mxu0 0.0
      %450 = vmatprep.subr.mxu0 0.0
      %451 = vmatpush1.msra.mxu0 0.0
      %452 = vmatprep.subr.mxu0 0.0
      %453 = vmatpush1.msra.mxu0 0.0
      %454 = vmatprep.subr.mxu0 0.0
      %455 = vmatpush1.msra.mxu0 0.0
      %456 = vmatprep.subr.mxu0 0.0
      %457 = vmatpush1.msra.mxu0 0.0
      %458 = vmatprep.subr.mxu0 0.0
      %459 = vmatpush1.msra.mxu0 0.0
      %460 = vmatprep.subr.mxu0 0.0
      %461 = vmatpush1.msra.mxu0 0.0
      %462 = vmatprep.subr.mxu0 0.0
      %463 = vmatpush1.msra.mxu0 0.0
      %464 = vmatprep.subr.mxu0 0.0
      %465 = vmatpush1.msra.mxu0 0.0
      %466 = vmatprep.subr.mxu0 0.0
      %467 = vmatpush1.msra.mxu0 0.0
      %468 = vmatprep.subr.mxu0 0.0
      %469 = vmatpush1.msra.mxu0 0.0
      %470 = vmatprep.mubr.f32.mxu0 0.0
      %471 = vmatmul.mubr.f32.gmra.mrb[0].mxu0 %v148
      %v472 = vpop.f32.mrb[0].mxu0
      %v473 = vadd.f32 0.0, %v472
      %v474 = vpop.f32.mrb[0].mxu0
      %475 = vmatprep.mubr.f32.mxu0 0.0
      %476 = vmatmul.mubr.f32.gmra.mrb[0].mxu0 %v149
      %v477 = vpop.f32.mrb[0].mxu0
      %v478 = vadd.f32 0.0, %v477
      %v479 = vpop.f32.mrb[0].mxu0
      %480 = vmatprep.mubr.f32.mxu0 0.0
      %481 = vmatmul.mubr.f32.gmra.mrb[0].mxu0 %v150
      %v482 = vpop.f32.mrb[0].mxu0
      %v483 = vadd.f32 0.0, %v482
      %v484 = vpop.f32.mrb[0].mxu0
      %485 = vmatprep.mubr.f32.mxu0 0.0
      %486 = vmatmul.mubr.f32.gmra.mrb[0].mxu0 %v151
      %v487 = vpop.f32.mrb[0].mxu0
      %v488 = vadd.f32 0.0, %v487
      %v489 = vpop.f32.mrb[0].mxu0
      %490 = vmatprep.mubr.f32.mxu0 0.0
      %491 = vmatmul.mubr.f32.gmra.mrb[0].mxu0 %v152
      %v492 = vpop.f32.mrb[0].mxu0
      %v493 = vadd.f32 0.0, %v492
      %v494 = vpop.f32.mrb[0].mxu0
      %495 = vmatprep.mubr.f32.mxu0 0.0
      %496 = vmatmul.mubr.f32.gmra.mrb[0].mxu0 %v153
      %v497 = vpop.f32.mrb[0].mxu0
      %v498 = vadd.f32 0.0, %v497
      %v499 = vpop.f32.mrb[0].mxu0
      %500 = vmatprep.mubr.f32.mxu0 0.0
      %501 = vmatmul.mubr.f32.gmra.mrb[0].mxu0 %v154
      %v502 = vpop.f32.mrb[0].mxu0
      %v503 = vadd.f32 0.0, %v502
      %v504 = vpop.f32.mrb[0].mxu0
      %505 = vmatprep.mubr.f32.mxu0 0.0
      %506 = vmatmul.mubr.f32.gmra.mrb[0].mxu0 %v155
      %v507 = vpop.f32.mrb[0].mxu0
      %v508 = vadd.f32 0.0, %v507
      %v509 = vpop.f32.mrb[0].mxu0
      %510 = vmatprep.mubr.f32.mxu0 0.0
      %511 = vmatmul.mubr.f32.gmra.mrb[0].mxu0 %v156
      %v512 = vpop.f32.mrb[0].mxu0
      %v513 = vadd.f32 0.0, %v512
      %v514 = vpop.f32.mrb[0].mxu0
      %515 = vmatprep.mubr.f32.mxu0 0.0
      %516 = vmatmul.mubr.f32.gmra.mrb[0].mxu0 %v157
      %v517 = vpop.f32.mrb[0].mxu0
      %v518 = vadd.f32 0.0, %v517
      %v519 = vpop.f32.mrb[0].mxu0
      %520 = vmatprep.mubr.f32.mxu0 0.0
      %521 = vmatmul.mubr.f32.gmra.mrb[0].mxu0 %v158
      %v522 = vpop.f32.mrb[0].mxu0
      %v523 = vadd.f32 0.0, %v522
      %v524 = vpop.f32.mrb[0].mxu0
      %525 = vmatprep.mubr.f32.mxu0 0.0
      %526 = vmatmul.mubr.f32.gmra.mrb[0].mxu0 %v159
      %v527 = vpop.f32.mrb[0].mxu0
      %v528 = vadd.f32 0.0, %v527
      %v529 = vpop.f32.mrb[0].mxu0
      %530 = vmatprep.mubr.f32.mxu0 0.0
      %531 = vmatmul.mubr.f32.gmra.mrb[0].mxu0 %v160
      %v532 = vpop.f32.mrb[0].mxu0
      %v533 = vadd.f32 0.0, %v532
      %v534 = vpop.f32.mrb[0].mxu0
      %535 = vmatprep.mubr.f32.mxu0 0.0
      %536 = vmatmul.mubr.f32.gmra.mrb[0].mxu0 %v161
      %v537 = vpop.f32.mrb[0].mxu0
      %v538 = vadd.f32 0.0, %v537
      %v539 = vpop.f32.mrb[0].mxu0
      %540 = vmatprep.mubr.f32.mxu0 0.0
      %541 = vmatmul.mubr.f32.gmra.mrb[0].mxu0 %v162
      %v542 = vpop.f32.mrb[0].mxu0
      %v543 = vadd.f32 0.0, %v542
      %v544 = vpop.f32.mrb[0].mxu0
      %545 = vmatprep.mubr.f32.mxu0 0.0
      %546 = vmatmul.mubr.f32.gmra.mrb[0].mxu0 %v163
      %v547 = vpop.f32.mrb[0].mxu0
      %v548 = vadd.f32 0.0, %v547
      %v549 = vpop.f32.mrb[0].mxu0
      %550 = vdwg.mxu0
      %v551 = vmax.f32 %v473, 0.0
      %v552 = vmax.f32 %v478, 0.0
      %v553 = vmax.f32 %v483, 0.0
      %v554 = vmax.f32 %v488, 0.0
      %v555 = vmax.f32 %v493, 0.0
      %v556 = vmax.f32 %v498, 0.0
      %v557 = vmax.f32 %v503, 0.0
      %v558 = vmax.f32 %v508, 0.0
      %v559 = vmax.f32 %v513, 0.0
      %v560 = vmax.f32 %v518, 0.0
      %v561 = vmax.f32 %v523, 0.0
      %v562 = vmax.f32 %v528, 0.0
      %v563 = vmax.f32 %v533, 0.0
      %v564 = vmax.f32 %v538, 0.0
      %v565 = vmax.f32 %v543, 0.0
      %v566 = vmax.f32 %v548, 0.0
      %vm567 = vcmask 261120
      %v569 = vsel %vm567, %v551, 0
      %v572 = vsel %vm567, %v552, 0
      %v575 = vsel %vm567, %v553, 0
      %v578 = vsel %vm567, %v554, 0
      %v581 = vsel %vm567, %v555, 0
      %v584 = vsel %vm567, %v556, 0
      %v587 = vsel %vm567, %v557, 0
      %v590 = vsel %vm567, %v558, 0
      %v593 = vsel %vm567, %v559, 0
      %v596 = vsel %vm567, %v560, 0
      %v599 = vsel %vm567, %v561, 0
      %v602 = vsel %vm567, %v562, 0
      %v605 = vsel %vm567, %v563, 0
      %v608 = vsel %vm567, %v564, 0
      %v611 = vsel %vm567, %v565, 0
      %v614 = vsel %vm567, %v566, 0
      %616 = vmatprep.subr.mxu0 0.0
      %617 = vmatpush1.msra.mxu0 %v19
      %618 = vmatprep.subr.mxu0 0.0
      %619 = vmatpush1.msra.mxu0 %v20
      %620 = vmatprep.subr.mxu0 0.0
      %621 = vmatpush1.msra.mxu0 %v21
      %622 = vmatprep.subr.mxu0 0.0
      %623 = vmatpush1.msra.mxu0 %v22
      %624 = vmatprep.subr.mxu0 0.0
      %625 = vmatpush1.msra.mxu0 0.0
      %626 = vmatprep.subr.mxu0 0.0
      %627 = vmatpush1.msra.mxu0 0.0
      %628 = vmatprep.subr.mxu0 0.0
      %629 = vmatpush1.msra.mxu0 0.0
      %630 = vmatprep.subr.mxu0 0.0
      %631 = vmatpush1.msra.mxu0 0.0
      %632 = vmatprep.subr.mxu0 0.0
      %633 = vmatpush1.msra.mxu0 0.0
      %634 = vmatprep.subr.mxu0 0.0
      %635 = vmatpush1.msra.mxu0 0.0
      %636 = vmatprep.subr.mxu0 0.0
      %637 = vmatpush1.msra.mxu0 0.0
      %638 = vmatprep.subr.mxu0 0.0
      %639 = vmatpush1.msra.mxu0 0.0
      %640 = vmatprep.subr.mxu0 0.0
      %641 = vmatpush1.msra.mxu0 0.0
      %642 = vmatprep.subr.mxu0 0.0
      %643 = vmatpush1.msra.mxu0 0.0
      %644 = vmatprep.subr.mxu0 0.0
      %645 = vmatpush1.msra.mxu0 0.0
      %646 = vmatprep.subr.mxu0 0.0
      %647 = vmatpush1.msra.mxu0 0.0
      %648 = vmatprep.subr.mxu0 0.0
      %649 = vmatpush1.msra.mxu0 0.0
      %650 = vmatprep.subr.mxu0 0.0
      %651 = vmatpush1.msra.mxu0 0.0
      %652 = vmatprep.subr.mxu0 0.0
      %653 = vmatpush1.msra.mxu0 0.0
      %654 = vmatprep.subr.mxu0 0.0
      %655 = vmatpush1.msra.mxu0 0.0
      %656 = vmatprep.subr.mxu0 0.0
      %657 = vmatpush1.msra.mxu0 0.0
      %658 = vmatprep.subr.mxu0 0.0
      %659 = vmatpush1.msra.mxu0 0.0
      %660 = vmatprep.subr.mxu0 0.0
      %661 = vmatpush1.msra.mxu0 0.0
      %662 = vmatprep.subr.mxu0 0.0
      %663 = vmatpush1.msra.mxu0 0.0
      %664 = vmatprep.subr.mxu0 0.0
      %665 = vmatpush1.msra.mxu0 0.0
      %666 = vmatprep.subr.mxu0 0.0
      %667 = vmatpush1.msra.mxu0 0.0
      %668 = vmatprep.subr.mxu0 0.0
      %669 = vmatpush1.msra.mxu0 0.0
      %670 = vmatprep.subr.mxu0 0.0
      %671 = vmatpush1.msra.mxu0 0.0
      %672 = vmatprep.subr.mxu0 0.0
      %673 = vmatpush1.msra.mxu0 0.0
      %674 = vmatprep.subr.mxu0 0.0
      %675 = vmatpush1.msra.mxu0 0.0
      %676 = vmatprep.subr.mxu0 0.0
      %677 = vmatpush1.msra.mxu0 0.0
      %678 = vmatprep.subr.mxu0 0.0
      %679 = vmatpush1.msra.mxu0 0.0
      %680 = vmatprep.mubr.f32.mxu0 0.0
      %681 = vmatmul.mubr.f32.gmra.mrb[0].mxu0 %v569
      %v682 = vpop.f32.mrb[0].mxu0
      %v683 = vadd.f32 0.0, %v682
      %v684 = vpop.f32.mrb[0].mxu0
      %685 = vmatprep.mubr.f32.mxu0 0.0
      %686 = vmatmul.mubr.f32.gmra.mrb[0].mxu0 %v572
      %v687 = vpop.f32.mrb[0].mxu0
      %v688 = vadd.f32 0.0, %v687
      %v689 = vpop.f32.mrb[0].mxu0
      %690 = vmatprep.mubr.f32.mxu0 0.0
      %691 = vmatmul.mubr.f32.gmra.mrb[0].mxu0 %v575
      %v692 = vpop.f32.mrb[0].mxu0
      %v693 = vadd.f32 0.0, %v692
      %v694 = vpop.f32.mrb[0].mxu0
      %695 = vmatprep.mubr.f32.mxu0 0.0
      %696 = vmatmul.mubr.f32.gmra.mrb[0].mxu0 %v578
      %v697 = vpop.f32.mrb[0].mxu0
      %v698 = vadd.f32 0.0, %v697
      %v699 = vpop.f32.mrb[0].mxu0
      %700 = vmatprep.mubr.f32.mxu0 0.0
      %701 = vmatmul.mubr.f32.gmra.mrb[0].mxu0 %v581
      %v702 = vpop.f32.mrb[0].mxu0
      %v703 = vadd.f32 0.0, %v702
      %v704 = vpop.f32.mrb[0].mxu0
      %705 = vmatprep.mubr.f32.mxu0 0.0
      %706 = vmatmul.mubr.f32.gmra.mrb[0].mxu0 %v584
      %v707 = vpop.f32.mrb[0].mxu0
      %v708 = vadd.f32 0.0, %v707
      %v709 = vpop.f32.mrb[0].mxu0
      %710 = vmatprep.mubr.f32.mxu0 0.0
      %711 = vmatmul.mubr.f32.gmra.mrb[0].mxu0 %v587
      %v712 = vpop.f32.mrb[0].mxu0
      %v713 = vadd.f32 0.0, %v712
      %v714 = vpop.f32.mrb[0].mxu0
      %715 = vmatprep.mubr.f32.mxu0 0.0
      %716 = vmatmul.mubr.f32.gmra.mrb[0].mxu0 %v590
      %v717 = vpop.f32.mrb[0].mxu0
      %v718 = vadd.f32 0.0, %v717
      %v719 = vpop.f32.mrb[0].mxu0
      %720 = vmatprep.mubr.f32.mxu0 0.0
      %721 = vmatmul.mubr.f32.gmra.mrb[0].mxu0 %v593
      %v722 = vpop.f32.mrb[0].mxu0
      %v723 = vadd.f32 0.0, %v722
      %v724 = vpop.f32.mrb[0].mxu0
      %725 = vmatprep.mubr.f32.mxu0 0.0
      %726 = vmatmul.mubr.f32.gmra.mrb[0].mxu0 %v596
      %v727 = vpop.f32.mrb[0].mxu0
      %v728 = vadd.f32 0.0, %v727
      %v729 = vpop.f32.mrb[0].mxu0
      %730 = vmatprep.mubr.f32.mxu0 0.0
      %731 = vmatmul.mubr.f32.gmra.mrb[0].mxu0 %v599
      %v732 = vpop.f32.mrb[0].mxu0
      %v733 = vadd.f32 0.0, %v732
      %v734 = vpop.f32.mrb[0].mxu0
      %735 = vmatprep.mubr.f32.mxu0 0.0
      %736 = vmatmul.mubr.f32.gmra.mrb[0].mxu0 %v602
      %v737 = vpop.f32.mrb[0].mxu0
      %v738 = vadd.f32 0.0, %v737
      %v739 = vpop.f32.mrb[0].mxu0
      %740 = vmatprep.mubr.f32.mxu0 0.0
      %741 = vmatmul.mubr.f32.gmra.mrb[0].mxu0 %v605
      %v742 = vpop.f32.mrb[0].mxu0
      %v743 = vadd.f32 0.0, %v742
      %v744 = vpop.f32.mrb[0].mxu0
      %745 = vmatprep.mubr.f32.mxu0 0.0
      %746 = vmatmul.mubr.f32.gmra.mrb[0].mxu0 %v608
      %v747 = vpop.f32.mrb[0].mxu0
      %v748 = vadd.f32 0.0, %v747
      %v749 = vpop.f32.mrb[0].mxu0
      %750 = vmatprep.mubr.f32.mxu0 0.0
      %751 = vmatmul.mubr.f32.gmra.mrb[0].mxu0 %v611
      %v752 = vpop.f32.mrb[0].mxu0
      %v753 = vadd.f32 0.0, %v752
      %v754 = vpop.f32.mrb[0].mxu0
      %755 = vmatprep.mubr.f32.mxu0 0.0
      %756 = vmatmul.mubr.f32.gmra.mrb[0].mxu0 %v614
      %v757 = vpop.f32.mrb[0].mxu0
      %v758 = vadd.f32 0.0, %v757
      %v759 = vpop.f32.mrb[0].mxu0
      %760 = vdwg.mxu0
      %761 = vmatprep.subr.mxu0 0.0
      %762 = vmatpush1.msra.mxu0 %v683
      %763 = vmatprep.subr.mxu0 0.0
      %764 = vmatpush1.msra.mxu0 %v688
      %765 = vmatprep.subr.mxu0 0.0
      %766 = vmatpush1.msra.mxu0 %v693
      %767 = vmatprep.subr.mxu0 0.0
      %768 = vmatpush1.msra.mxu0 %v698
      %769 = vmatprep.subr.mxu0 0.0
      %770 = vmatpush1.msra.mxu0 %v703
      %771 = vmatprep.subr.mxu0 0.0
      %772 = vmatpush1.msra.mxu0 %v708
      %773 = vmatprep.subr.mxu0 0.0
      %774 = vmatpush1.msra.mxu0 %v713
      %775 = vmatprep.subr.mxu0 0.0
      %776 = vmatpush1.msra.mxu0 %v718
      %777 = vmatprep.subr.mxu0 0.0
      %778 = vmatpush1.msra.mxu0 %v723
      %779 = vmatprep.subr.mxu0 0.0
      %780 = vmatpush1.msra.mxu0 %v728
      %781 = vmatprep.subr.mxu0 0.0
      %782 = vmatpush1.msra.mxu0 %v733
      %783 = vmatprep.subr.mxu0 0.0
      %784 = vmatpush1.msra.mxu0 %v738
      %785 = vmatprep.subr.mxu0 0.0
      %786 = vmatpush1.msra.mxu0 %v743
      %787 = vmatprep.subr.mxu0 0.0
      %788 = vmatpush1.msra.mxu0 %v748
      %789 = vmatprep.subr.mxu0 0.0
      %790 = vmatpush1.msra.mxu0 %v753
      %791 = vmatprep.subr.mxu0 0.0
      %792 = vmatpush1.msra.mxu0 %v758
      %793 = vmatprep.subr.mxu0 0.0
      %794 = vmatpush1.msra.mxu0 0.0
      %795 = vmatprep.subr.mxu0 0.0
      %796 = vmatpush1.msra.mxu0 0.0
      %797 = vmatprep.subr.mxu0 0.0
      %798 = vmatpush1.msra.mxu0 0.0
      %799 = vmatprep.subr.mxu0 0.0
      %800 = vmatpush1.msra.mxu0 0.0
      %801 = vmatprep.subr.mxu0 0.0
      %802 = vmatpush1.msra.mxu0 0.0
      %803 = vmatprep.subr.mxu0 0.0
      %804 = vmatpush1.msra.mxu0 0.0
      %805 = vmatprep.subr.mxu0 0.0
      %806 = vmatpush1.msra.mxu0 0.0
      %807 = vmatprep.subr.mxu0 0.0
      %808 = vmatpush1.msra.mxu0 0.0
      %809 = vmatprep.subr.mxu0 0.0
      %810 = vmatpush1.msra.mxu0 0.0
      %811 = vmatprep.subr.mxu0 0.0
      %812 = vmatpush1.msra.mxu0 0.0
      %813 = vmatprep.subr.mxu0 0.0
      %814 = vmatpush1.msra.mxu0 0.0
      %815 = vmatprep.subr.mxu0 0.0
      %816 = vmatpush1.msra.mxu0 0.0
      %817 = vmatprep.subr.mxu0 0.0
      %818 = vmatpush1.msra.mxu0 0.0
      %819 = vmatprep.subr.mxu0 0.0
      %820 = vmatpush1.msra.mxu0 0.0
      %821 = vmatprep.subr.mxu0 0.0
      %822 = vmatpush1.msra.mxu0 0.0
      %823 = vmatprep.subr.mxu0 0.0
      %824 = vmatpush1.msra.mxu0 0.0
      %825 = vmatprep.mubr.f32.mxu0 0.0
      %826 = vmatmul.mubr.f32.gmra.mrb[0].mxu0 %v148
      %v827 = vpop.f32.mrb[0].mxu0
      %v828 = vadd.f32 0.0, %v827
      %v829 = vpop.f32.mrb[0].mxu0
      %830 = vmatprep.mubr.f32.mxu0 0.0
      %831 = vmatmul.mubr.f32.gmra.mrb[0].mxu0 %v149
      %v832 = vpop.f32.mrb[0].mxu0
      %v833 = vadd.f32 0.0, %v832
      %v834 = vpop.f32.mrb[0].mxu0
      %835 = vmatprep.mubr.f32.mxu0 0.0
      %836 = vmatmul.mubr.f32.gmra.mrb[0].mxu0 %v150
      %v837 = vpop.f32.mrb[0].mxu0
      %v838 = vadd.f32 0.0, %v837
      %v839 = vpop.f32.mrb[0].mxu0
      %840 = vmatprep.mubr.f32.mxu0 0.0
      %841 = vmatmul.mubr.f32.gmra.mrb[0].mxu0 %v151
      %v842 = vpop.f32.mrb[0].mxu0
      %v843 = vadd.f32 0.0, %v842
      %v844 = vpop.f32.mrb[0].mxu0
      %845 = vmatprep.mubr.f32.mxu0 0.0
      %846 = vmatmul.mubr.f32.gmra.mrb[0].mxu0 %v152
      %v847 = vpop.f32.mrb[0].mxu0
      %v848 = vadd.f32 0.0, %v847
      %v849 = vpop.f32.mrb[0].mxu0
      %850 = vmatprep.mubr.f32.mxu0 0.0
      %851 = vmatmul.mubr.f32.gmra.mrb[0].mxu0 %v153
      %v852 = vpop.f32.mrb[0].mxu0
      %v853 = vadd.f32 0.0, %v852
      %v854 = vpop.f32.mrb[0].mxu0
      %855 = vmatprep.mubr.f32.mxu0 0.0
      %856 = vmatmul.mubr.f32.gmra.mrb[0].mxu0 %v154
      %v857 = vpop.f32.mrb[0].mxu0
      %v858 = vadd.f32 0.0, %v857
      %v859 = vpop.f32.mrb[0].mxu0
      %860 = vmatprep.mubr.f32.mxu0 0.0
      %861 = vmatmul.mubr.f32.gmra.mrb[0].mxu0 %v155
      %v862 = vpop.f32.mrb[0].mxu0
      %v863 = vadd.f32 0.0, %v862
      %v864 = vpop.f32.mrb[0].mxu0
      %865 = vmatprep.mubr.f32.mxu0 0.0
      %866 = vmatmul.mubr.f32.gmra.mrb[0].mxu0 %v156
      %v867 = vpop.f32.mrb[0].mxu0
      %v868 = vadd.f32 0.0, %v867
      %v869 = vpop.f32.mrb[0].mxu0
      %870 = vmatprep.mubr.f32.mxu0 0.0
      %871 = vmatmul.mubr.f32.gmra.mrb[0].mxu0 %v157
      %v872 = vpop.f32.mrb[0].mxu0
      %v873 = vadd.f32 0.0, %v872
      %v874 = vpop.f32.mrb[0].mxu0
      %875 = vmatprep.mubr.f32.mxu0 0.0
      %876 = vmatmul.mubr.f32.gmra.mrb[0].mxu0 %v158
      %v877 = vpop.f32.mrb[0].mxu0
      %v878 = vadd.f32 0.0, %v877
      %v879 = vpop.f32.mrb[0].mxu0
      %880 = vmatprep.mubr.f32.mxu0 0.0
      %881 = vmatmul.mubr.f32.gmra.mrb[0].mxu0 %v159
      %v882 = vpop.f32.mrb[0].mxu0
      %v883 = vadd.f32 0.0, %v882
      %v884 = vpop.f32.mrb[0].mxu0
      %885 = vmatprep.mubr.f32.mxu0 0.0
      %886 = vmatmul.mubr.f32.gmra.mrb[0].mxu0 %v160
      %v887 = vpop.f32.mrb[0].mxu0
      %v888 = vadd.f32 0.0, %v887
      %v889 = vpop.f32.mrb[0].mxu0
      %890 = vmatprep.mubr.f32.mxu0 0.0
      %891 = vmatmul.mubr.f32.gmra.mrb[0].mxu0 %v161
      %v892 = vpop.f32.mrb[0].mxu0
      %v893 = vadd.f32 0.0, %v892
      %v894 = vpop.f32.mrb[0].mxu0
      %895 = vmatprep.mubr.f32.mxu0 0.0
      %896 = vmatmul.mubr.f32.gmra.mrb[0].mxu0 %v162
      %v897 = vpop.f32.mrb[0].mxu0
      %v898 = vadd.f32 0.0, %v897
      %v899 = vpop.f32.mrb[0].mxu0
      %900 = vmatprep.mubr.f32.mxu0 0.0
      %901 = vmatmul.mubr.f32.gmra.mrb[0].mxu0 %v163
      %v902 = vpop.f32.mrb[0].mxu0
      %v903 = vadd.f32 0.0, %v902
      %v904 = vpop.f32.mrb[0].mxu0
      %905 = vdwg.mxu0
      %v906 = vmax.f32 %v828, 0.0
      %v907 = vmax.f32 %v833, 0.0
      %v908 = vmax.f32 %v838, 0.0
      %v909 = vmax.f32 %v843, 0.0
      %v910 = vmax.f32 %v848, 0.0
      %v911 = vmax.f32 %v853, 0.0
      %v912 = vmax.f32 %v858, 0.0
      %v913 = vmax.f32 %v863, 0.0
      %v914 = vmax.f32 %v868, 0.0
      %v915 = vmax.f32 %v873, 0.0
      %v916 = vmax.f32 %v878, 0.0
      %v917 = vmax.f32 %v883, 0.0
      %v918 = vmax.f32 %v888, 0.0
      %v919 = vmax.f32 %v893, 0.0
      %v920 = vmax.f32 %v898, 0.0
      %v921 = vmax.f32 %v903, 0.0
      %v923 = vsel %vm567, %v906, 0
      %v926 = vsel %vm567, %v907, 0
      %v929 = vsel %vm567, %v908, 0
      %v932 = vsel %vm567, %v909, 0
      %v935 = vsel %vm567, %v910, 0
      %v938 = vsel %vm567, %v911, 0
      %v941 = vsel %vm567, %v912, 0
      %v944 = vsel %vm567, %v913, 0
      %v947 = vsel %vm567, %v914, 0
      %v950 = vsel %vm567, %v915, 0
      %v953 = vsel %vm567, %v916, 0
      %v956 = vsel %vm567, %v917, 0
      %v959 = vsel %vm567, %v918, 0
      %v962 = vsel %vm567, %v919, 0
      %v965 = vsel %vm567, %v920, 0
      %v968 = vsel %vm567, %v921, 0
      %970 = vmatprep.subr.mxu0 0.0
      %971 = vmatpush1.msra.mxu0 %v23
      %972 = vmatprep.subr.mxu0 0.0
      %973 = vmatpush1.msra.mxu0 %v24
      %974 = vmatprep.subr.mxu0 0.0
      %975 = vmatpush1.msra.mxu0 %v25
      %976 = vmatprep.subr.mxu0 0.0
      %977 = vmatpush1.msra.mxu0 %v26
      %978 = vmatprep.subr.mxu0 0.0
      %979 = vmatpush1.msra.mxu0 0.0
      %980 = vmatprep.subr.mxu0 0.0
      %981 = vmatpush1.msra.mxu0 0.0
      %982 = vmatprep.subr.mxu0 0.0
      %983 = vmatpush1.msra.mxu0 0.0
      %984 = vmatprep.subr.mxu0 0.0
      %985 = vmatpush1.msra.mxu0 0.0
      %986 = vmatprep.subr.mxu0 0.0
      %987 = vmatpush1.msra.mxu0 0.0
      %988 = vmatprep.subr.mxu0 0.0
      %989 = vmatpush1.msra.mxu0 0.0
      %990 = vmatprep.subr.mxu0 0.0
      %991 = vmatpush1.msra.mxu0 0.0
      %992 = vmatprep.subr.mxu0 0.0
      %993 = vmatpush1.msra.mxu0 0.0
      %994 = vmatprep.subr.mxu0 0.0
      %995 = vmatpush1.msra.mxu0 0.0
      %996 = vmatprep.subr.mxu0 0.0
      %997 = vmatpush1.msra.mxu0 0.0
      %998 = vmatprep.subr.mxu0 0.0
      %999 = vmatpush1.msra.mxu0 0.0
      %1000 = vmatprep.subr.mxu0 0.0
      %1001 = vmatpush1.msra.mxu0 0.0
      %1002 = vmatprep.subr.mxu0 0.0
      %1003 = vmatpush1.msra.mxu0 0.0
      %1004 = vmatprep.subr.mxu0 0.0
      %1005 = vmatpush1.msra.mxu0 0.0
      %1006 = vmatprep.subr.mxu0 0.0
      %1007 = vmatpush1.msra.mxu0 0.0
      %1008 = vmatprep.subr.mxu0 0.0
      %1009 = vmatpush1.msra.mxu0 0.0
      %1010 = vmatprep.subr.mxu0 0.0
      %1011 = vmatpush1.msra.mxu0 0.0
      %1012 = vmatprep.subr.mxu0 0.0
      %1013 = vmatpush1.msra.mxu0 0.0
      %1014 = vmatprep.subr.mxu0 0.0
      %1015 = vmatpush1.msra.mxu0 0.0
      %1016 = vmatprep.subr.mxu0 0.0
      %1017 = vmatpush1.msra.mxu0 0.0
      %1018 = vmatprep.subr.mxu0 0.0
      %1019 = vmatpush1.msra.mxu0 0.0
      %1020 = vmatprep.subr.mxu0 0.0
      %1021 = vmatpush1.msra.mxu0 0.0
      %1022 = vmatprep.subr.mxu0 0.0
      %1023 = vmatpush1.msra.mxu0 0.0
      %1024 = vmatprep.subr.mxu0 0.0
      %1025 = vmatpush1.msra.mxu0 0.0
      %1026 = vmatprep.subr.mxu0 0.0
      %1027 = vmatpush1.msra.mxu0 0.0
      %1028 = vmatprep.subr.mxu0 0.0
      %1029 = vmatpush1.msra.mxu0 0.0
      %1030 = vmatprep.subr.mxu0 0.0
      %1031 = vmatpush1.msra.mxu0 0.0
      %1032 = vmatprep.subr.mxu0 0.0
      %1033 = vmatpush1.msra.mxu0 0.0
      %1034 = vmatprep.mubr.f32.mxu0 0.0
      %1035 = vmatmul.mubr.f32.gmra.mrb[0].mxu0 %v923
      %v1036 = vpop.f32.mrb[0].mxu0
      %v1037 = vadd.f32 0.0, %v1036
      %v1038 = vpop.f32.mrb[0].mxu0
      %1039 = vmatprep.mubr.f32.mxu0 0.0
      %1040 = vmatmul.mubr.f32.gmra.mrb[0].mxu0 %v926
      %v1041 = vpop.f32.mrb[0].mxu0
      %v1042 = vadd.f32 0.0, %v1041
      %v1043 = vpop.f32.mrb[0].mxu0
      %1044 = vmatprep.mubr.f32.mxu0 0.0
      %1045 = vmatmul.mubr.f32.gmra.mrb[0].mxu0 %v929
      %v1046 = vpop.f32.mrb[0].mxu0
      %v1047 = vadd.f32 0.0, %v1046
      %v1048 = vpop.f32.mrb[0].mxu0
      %1049 = vmatprep.mubr.f32.mxu0 0.0
      %1050 = vmatmul.mubr.f32.gmra.mrb[0].mxu0 %v932
      %v1051 = vpop.f32.mrb[0].mxu0
      %v1052 = vadd.f32 0.0, %v1051
      %v1053 = vpop.f32.mrb[0].mxu0
      %1054 = vmatprep.mubr.f32.mxu0 0.0
      %1055 = vmatmul.mubr.f32.gmra.mrb[0].mxu0 %v935
      %v1056 = vpop.f32.mrb[0].mxu0
      %v1057 = vadd.f32 0.0, %v1056
      %v1058 = vpop.f32.mrb[0].mxu0
      %1059 = vmatprep.mubr.f32.mxu0 0.0
      %1060 = vmatmul.mubr.f32.gmra.mrb[0].mxu0 %v938
      %v1061 = vpop.f32.mrb[0].mxu0
      %v1062 = vadd.f32 0.0, %v1061
      %v1063 = vpop.f32.mrb[0].mxu0
      %1064 = vmatprep.mubr.f32.mxu0 0.0
      %1065 = vmatmul.mubr.f32.gmra.mrb[0].mxu0 %v941
      %v1066 = vpop.f32.mrb[0].mxu0
      %v1067 = vadd.f32 0.0, %v1066
      %v1068 = vpop.f32.mrb[0].mxu0
      %1069 = vmatprep.mubr.f32.mxu0 0.0
      %1070 = vmatmul.mubr.f32.gmra.mrb[0].mxu0 %v944
      %v1071 = vpop.f32.mrb[0].mxu0
      %v1072 = vadd.f32 0.0, %v1071
      %v1073 = vpop.f32.mrb[0].mxu0
      %1074 = vmatprep.mubr.f32.mxu0 0.0
      %1075 = vmatmul.mubr.f32.gmra.mrb[0].mxu0 %v947
      %v1076 = vpop.f32.mrb[0].mxu0
      %v1077 = vadd.f32 0.0, %v1076
      %v1078 = vpop.f32.mrb[0].mxu0
      %1079 = vmatprep.mubr.f32.mxu0 0.0
      %1080 = vmatmul.mubr.f32.gmra.mrb[0].mxu0 %v950
      %v1081 = vpop.f32.mrb[0].mxu0
      %v1082 = vadd.f32 0.0, %v1081
      %v1083 = vpop.f32.mrb[0].mxu0
      %1084 = vmatprep.mubr.f32.mxu0 0.0
      %1085 = vmatmul.mubr.f32.gmra.mrb[0].mxu0 %v953
      %v1086 = vpop.f32.mrb[0].mxu0
      %v1087 = vadd.f32 0.0, %v1086
      %v1088 = vpop.f32.mrb[0].mxu0
      %1089 = vmatprep.mubr.f32.mxu0 0.0
      %1090 = vmatmul.mubr.f32.gmra.mrb[0].mxu0 %v956
      %v1091 = vpop.f32.mrb[0].mxu0
      %v1092 = vadd.f32 0.0, %v1091
      %v1093 = vpop.f32.mrb[0].mxu0
      %1094 = vmatprep.mubr.f32.mxu0 0.0
      %1095 = vmatmul.mubr.f32.gmra.mrb[0].mxu0 %v959
      %v1096 = vpop.f32.mrb[0].mxu0
      %v1097 = vadd.f32 0.0, %v1096
      %v1098 = vpop.f32.mrb[0].mxu0
      %1099 = vmatprep.mubr.f32.mxu0 0.0
      %1100 = vmatmul.mubr.f32.gmra.mrb[0].mxu0 %v962
      %v1101 = vpop.f32.mrb[0].mxu0
      %v1102 = vadd.f32 0.0, %v1101
      %v1103 = vpop.f32.mrb[0].mxu0
      %1104 = vmatprep.mubr.f32.mxu0 0.0
      %1105 = vmatmul.mubr.f32.gmra.mrb[0].mxu0 %v965
      %v1106 = vpop.f32.mrb[0].mxu0
      %v1107 = vadd.f32 0.0, %v1106
      %v1108 = vpop.f32.mrb[0].mxu0
      %1109 = vmatprep.mubr.f32.mxu0 0.0
      %1110 = vmatmul.mubr.f32.gmra.mrb[0].mxu0 %v968
      %v1111 = vpop.f32.mrb[0].mxu0
      %v1112 = vadd.f32 0.0, %v1111
      %v1113 = vpop.f32.mrb[0].mxu0
      %1114 = vdwg.mxu0
      %1115 = vmatprep.subr.mxu0 0.0
      %1116 = vmatpush1.msra.mxu0 %v1037
      %1117 = vmatprep.subr.mxu0 0.0
      %1118 = vmatpush1.msra.mxu0 %v1042
      %1119 = vmatprep.subr.mxu0 0.0
      %1120 = vmatpush1.msra.mxu0 %v1047
      %1121 = vmatprep.subr.mxu0 0.0
      %1122 = vmatpush1.msra.mxu0 %v1052
      %1123 = vmatprep.subr.mxu0 0.0
      %1124 = vmatpush1.msra.mxu0 %v1057
      %1125 = vmatprep.subr.mxu0 0.0
      %1126 = vmatpush1.msra.mxu0 %v1062
      %1127 = vmatprep.subr.mxu0 0.0
      %1128 = vmatpush1.msra.mxu0 %v1067
      %1129 = vmatprep.subr.mxu0 0.0
      %1130 = vmatpush1.msra.mxu0 %v1072
      %1131 = vmatprep.subr.mxu0 0.0
      %1132 = vmatpush1.msra.mxu0 %v1077
      %1133 = vmatprep.subr.mxu0 0.0
      %1134 = vmatpush1.msra.mxu0 %v1082
      %1135 = vmatprep.subr.mxu0 0.0
      %1136 = vmatpush1.msra.mxu0 %v1087
      %1137 = vmatprep.subr.mxu0 0.0
      %1138 = vmatpush1.msra.mxu0 %v1092
      %1139 = vmatprep.subr.mxu0 0.0
      %1140 = vmatpush1.msra.mxu0 %v1097
      %1141 = vmatprep.subr.mxu0 0.0
      %1142 = vmatpush1.msra.mxu0 %v1102
      %1143 = vmatprep.subr.mxu0 0.0
      %1144 = vmatpush1.msra.mxu0 %v1107
      %1145 = vmatprep.subr.mxu0 0.0
      %1146 = vmatpush1.msra.mxu0 %v1112
      %1147 = vmatprep.subr.mxu0 0.0
      %1148 = vmatpush1.msra.mxu0 0.0
      %1149 = vmatprep.subr.mxu0 0.0
      %1150 = vmatpush1.msra.mxu0 0.0
      %1151 = vmatprep.subr.mxu0 0.0
      %1152 = vmatpush1.msra.mxu0 0.0
      %1153 = vmatprep.subr.mxu0 0.0
      %1154 = vmatpush1.msra.mxu0 0.0
      %1155 = vmatprep.subr.mxu0 0.0
      %1156 = vmatpush1.msra.mxu0 0.0
      %1157 = vmatprep.subr.mxu0 0.0
      %1158 = vmatpush1.msra.mxu0 0.0
      %1159 = vmatprep.subr.mxu0 0.0
      %1160 = vmatpush1.msra.mxu0 0.0
      %1161 = vmatprep.subr.mxu0 0.0
      %1162 = vmatpush1.msra.mxu0 0.0
      %1163 = vmatprep.subr.mxu0 0.0
      %1164 = vmatpush1.msra.mxu0 0.0
      %1165 = vmatprep.subr.mxu0 0.0
      %1166 = vmatpush1.msra.mxu0 0.0
      %1167 = vmatprep.subr.mxu0 0.0
      %1168 = vmatpush1.msra.mxu0 0.0
      %1169 = vmatprep.subr.mxu0 0.0
      %1170 = vmatpush1.msra.mxu0 0.0
      %1171 = vmatprep.subr.mxu0 0.0
      %1172 = vmatpush1.msra.mxu0 0.0
      %1173 = vmatprep.subr.mxu0 0.0
      %1174 = vmatpush1.msra.mxu0 0.0
      %1175 = vmatprep.subr.mxu0 0.0
      %1176 = vmatpush1.msra.mxu0 0.0
      %1177 = vmatprep.subr.mxu0 0.0
      %1178 = vmatpush1.msra.mxu0 0.0
      %1179 = vmatprep.mubr.f32.mxu0 0.0
      %1180 = vmatmul.mubr.f32.gmra.mrb[0].mxu0 %v148
      %v1181 = vpop.f32.mrb[0].mxu0
      %v1182 = vadd.f32 0.0, %v1181
      %v1183 = vpop.f32.mrb[0].mxu0
      %1184 = vmatprep.mubr.f32.mxu0 0.0
      %1185 = vmatmul.mubr.f32.gmra.mrb[0].mxu0 %v149
      %v1186 = vpop.f32.mrb[0].mxu0
      %v1187 = vadd.f32 0.0, %v1186
      %v1188 = vpop.f32.mrb[0].mxu0
      %1189 = vmatprep.mubr.f32.mxu0 0.0
      %1190 = vmatmul.mubr.f32.gmra.mrb[0].mxu0 %v150
      %v1191 = vpop.f32.mrb[0].mxu0
      %v1192 = vadd.f32 0.0, %v1191
      %v1193 = vpop.f32.mrb[0].mxu0
      %1194 = vmatprep.mubr.f32.mxu0 0.0
      %1195 = vmatmul.mubr.f32.gmra.mrb[0].mxu0 %v151
      %v1196 = vpop.f32.mrb[0].mxu0
      %v1197 = vadd.f32 0.0, %v1196
      %v1198 = vpop.f32.mrb[0].mxu0
      %1199 = vmatprep.mubr.f32.mxu0 0.0
      %1200 = vmatmul.mubr.f32.gmra.mrb[0].mxu0 %v152
      %v1201 = vpop.f32.mrb[0].mxu0
      %v1202 = vadd.f32 0.0, %v1201
      %v1203 = vpop.f32.mrb[0].mxu0
      %1204 = vmatprep.mubr.f32.mxu0 0.0
      %1205 = vmatmul.mubr.f32.gmra.mrb[0].mxu0 %v153
      %v1206 = vpop.f32.mrb[0].mxu0
      %v1207 = vadd.f32 0.0, %v1206
      %v1208 = vpop.f32.mrb[0].mxu0
      %1209 = vmatprep.mubr.f32.mxu0 0.0
      %1210 = vmatmul.mubr.f32.gmra.mrb[0].mxu0 %v154
      %v1211 = vpop.f32.mrb[0].mxu0
      %v1212 = vadd.f32 0.0, %v1211
      %v1213 = vpop.f32.mrb[0].mxu0
      %1214 = vmatprep.mubr.f32.mxu0 0.0
      %1215 = vmatmul.mubr.f32.gmra.mrb[0].mxu0 %v155
      %v1216 = vpop.f32.mrb[0].mxu0
      %v1217 = vadd.f32 0.0, %v1216
      %v1218 = vpop.f32.mrb[0].mxu0
      %1219 = vmatprep.mubr.f32.mxu0 0.0
      %1220 = vmatmul.mubr.f32.gmra.mrb[0].mxu0 %v156
      %v1221 = vpop.f32.mrb[0].mxu0
      %v1222 = vadd.f32 0.0, %v1221
      %v1223 = vpop.f32.mrb[0].mxu0
      %1224 = vmatprep.mubr.f32.mxu0 0.0
      %1225 = vmatmul.mubr.f32.gmra.mrb[0].mxu0 %v157
      %v1226 = vpop.f32.mrb[0].mxu0
      %v1227 = vadd.f32 0.0, %v1226
      %v1228 = vpop.f32.mrb[0].mxu0
      %1229 = vmatprep.mubr.f32.mxu0 0.0
      %1230 = vmatmul.mubr.f32.gmra.mrb[0].mxu0 %v158
      %v1231 = vpop.f32.mrb[0].mxu0
      %v1232 = vadd.f32 0.0, %v1231
      %v1233 = vpop.f32.mrb[0].mxu0
      %1234 = vmatprep.mubr.f32.mxu0 0.0
      %1235 = vmatmul.mubr.f32.gmra.mrb[0].mxu0 %v159
      %v1236 = vpop.f32.mrb[0].mxu0
      %v1237 = vadd.f32 0.0, %v1236
      %v1238 = vpop.f32.mrb[0].mxu0
      %1239 = vmatprep.mubr.f32.mxu0 0.0
      %1240 = vmatmul.mubr.f32.gmra.mrb[0].mxu0 %v160
      %v1241 = vpop.f32.mrb[0].mxu0
      %v1242 = vadd.f32 0.0, %v1241
      %v1243 = vpop.f32.mrb[0].mxu0
      %1244 = vmatprep.mubr.f32.mxu0 0.0
      %1245 = vmatmul.mubr.f32.gmra.mrb[0].mxu0 %v161
      %v1246 = vpop.f32.mrb[0].mxu0
      %v1247 = vadd.f32 0.0, %v1246
      %v1248 = vpop.f32.mrb[0].mxu0
      %1249 = vmatprep.mubr.f32.mxu0 0.0
      %1250 = vmatmul.mubr.f32.gmra.mrb[0].mxu0 %v162
      %v1251 = vpop.f32.mrb[0].mxu0
      %v1252 = vadd.f32 0.0, %v1251
      %v1253 = vpop.f32.mrb[0].mxu0
      %1254 = vmatprep.mubr.f32.mxu0 0.0
      %1255 = vmatmul.mubr.f32.gmra.mrb[0].mxu0 %v163
      %v1256 = vpop.f32.mrb[0].mxu0
      %v1257 = vadd.f32 0.0, %v1256
      %v1258 = vpop.f32.mrb[0].mxu0
      %1259 = vdwg.mxu0
      %v1260 = vmax.f32 %v1182, 0.0
      %v1261 = vmax.f32 %v1187, 0.0
      %v1262 = vmax.f32 %v1192, 0.0
      %v1263 = vmax.f32 %v1197, 0.0
      %v1264 = vmax.f32 %v1202, 0.0
      %v1265 = vmax.f32 %v1207, 0.0
      %v1266 = vmax.f32 %v1212, 0.0
      %v1267 = vmax.f32 %v1217, 0.0
      %v1268 = vmax.f32 %v1222, 0.0
      %v1269 = vmax.f32 %v1227, 0.0
      %v1270 = vmax.f32 %v1232, 0.0
      %v1271 = vmax.f32 %v1237, 0.0
      %v1272 = vmax.f32 %v1242, 0.0
      %v1273 = vmax.f32 %v1247, 0.0
      %v1274 = vmax.f32 %v1252, 0.0
      %v1275 = vmax.f32 %v1257, 0.0
      %v1284 = vrot.slane %v1262, 7
      %vm1285 = vcmask 1041409
      %v1286 = vsel %vm1285, %v1284, %v1260
      %v1287 = vrot.slane %v1264, 6
      %vm1288 = vcmask 1042434
      %v1289 = vsel %vm1288, %v1287, %v1286
      %v1290 = vrot.slane %v1266, 5
      %vm1291 = vcmask 1043459
      %v1292 = vsel %vm1291, %v1290, %v1289
      %v1293 = vrot.slane %v1268, 4
      %vm1294 = vcmask 1044484
      %v1295 = vsel %vm1294, %v1293, %v1292
      %v1296 = vrot.slane %v1270, 3
      %vm1297 = vcmask 1045509
      %v1298 = vsel %vm1297, %v1296, %v1295
      %v1299 = vrot.slane %v1272, 2
      %vm1300 = vcmask 1046534
      %v1301 = vsel %vm1300, %v1299, %v1298
      %v1302 = vrot.slane %v1274, 1
      %vm1303 = vcmask 1047559
      %v1304 = vsel %vm1303, %v1302, %v1301
      %s1306 = scalar_lea.vmem [#allocation3], %s49
      %1307 = vst.msk [vmem:[%s1306] sm:$0xff] %vm228, %v1304
      %v1308 = vsel %vm1288, %v1284, %v1260
      %v1309 = vsel %vm1291, %v1287, %v1308
      %v1310 = vsel %vm1294, %v1290, %v1309
      %v1311 = vsel %vm1297, %v1293, %v1310
      %v1312 = vsel %vm1300, %v1296, %v1311
      %v1313 = vsel %vm1303, %v1299, %v1312
      %1314 = vrot.lane.b32.xlu0 %v1313, 8
      %v1315 = vpop.permute.xlu0 %1314
      %1316 = vrot.lane.b32.xlu0 %v1302, 8
      %v1317 = vpop.permute.xlu0 %1316
      %vm1320 = vcmask 130113
      %1321 = vst.msk [vmem:[%s1306 - $0x1] sm:$0xfe] %vm1320, %v1315
      %vm1322 = vcmask 122944
      %1323 = vst.msk [vmem:[%s1306 + $0x7] sm:$0x1] %vm1322, %v1317
      %v1324 = vsel %vm1291, %v1284, %v1260
      %v1325 = vsel %vm1294, %v1287, %v1324
      %v1326 = vsel %vm1297, %v1290, %v1325
      %v1327 = vsel %vm1300, %v1293, %v1326
      %v1328 = vsel %vm1303, %v1296, %v1327
      %v1329 = vsel %vm1285, %v1302, %v1299
      %1330 = vrot.lane.b32.xlu0 %v1328, 16
      %v1331 = vpop.permute.xlu0 %1330
      %1332 = vrot.lane.b32.xlu0 %v1329, 16
      %v1333 = vpop.permute.xlu0 %1332
      %vm1336 = vcmask 195714
      %1337 = vst.msk [vmem:[%s1306 - $0x2] sm:$0xfc] %vm1336, %v1331
      %vm1338 = vcmask 189568
      %1339 = vst.msk [vmem:[%s1306 + $0x6] sm:$0x3] %vm1338, %v1333
      %v1340 = vsel %vm1294, %v1284, %v1260
      %v1341 = vsel %vm1297, %v1287, %v1340
      %v1342 = vsel %vm1300, %v1290, %v1341
      %v1343 = vsel %vm1303, %v1293, %v1342
      %v1344 = vsel %vm1285, %v1299, %v1296
      %v1345 = vsel %vm1288, %v1302, %v1344
      %1346 = vrot.lane.b32.xlu0 %v1343, 24
      %v1347 = vpop.permute.xlu0 %1346
      %1348 = vrot.lane.b32.xlu0 %v1345, 24
      %v1349 = vpop.permute.xlu0 %1348
      %vm1352 = vcmask 261315
      %1353 = vst.msk [vmem:[%s1306 - $0x3] sm:$0xf8] %vm1352, %v1347
      %vm1354 = vcmask 256192
      %1355 = vst.msk [vmem:[%s1306 + $0x5] sm:$0x7] %vm1354, %v1349
      %v1356 = vsel %vm1297, %v1284, %v1260
      %v1357 = vsel %vm1300, %v1287, %v1356
      %v1358 = vsel %vm1303, %v1290, %v1357
      %v1359 = vsel %vm1285, %v1296, %v1293
      %v1360 = vsel %vm1288, %v1299, %v1359
      %v1361 = vsel %vm1291, %v1302, %v1360
      %1362 = vrot.lane.b32.xlu0 %v1358, 32
      %v1363 = vpop.permute.xlu0 %1362
      %1364 = vrot.lane.b32.xlu0 %v1361, 32
      %v1365 = vpop.permute.xlu0 %1364
      %vm1368 = vcmask 326916
      %1369 = vst.msk [vmem:[%s1306 - $0x4] sm:$0xf0] %vm1368, %v1363
      %vm1370 = vcmask 322816
      %1371 = vst.msk [vmem:[%s1306 + $0x4] sm:$0xf] %vm1370, %v1365
      %v1372 = vsel %vm1300, %v1284, %v1260
      %v1373 = vsel %vm1303, %v1287, %v1372
      %v1374 = vsel %vm1285, %v1293, %v1290
      %v1375 = vsel %vm1288, %v1296, %v1374
      %v1376 = vsel %vm1291, %v1299, %v1375
      %v1377 = vsel %vm1294, %v1302, %v1376
      %1378 = vrot.lane.b32.xlu0 %v1373, 40
      %v1379 = vpop.permute.xlu0 %1378
      %1380 = vrot.lane.b32.xlu0 %v1377, 40
      %v1381 = vpop.permute.xlu0 %1380
      %vm1384 = vcmask 392517
      %1385 = vst.msk [vmem:[%s1306 - $0x5] sm:$0xe0] %vm1384, %v1379
      %vm1386 = vcmask 389440
      %1387 = vst.msk [vmem:[%s1306 + $0x3] sm:$0x1f] %vm1386, %v1381
      %v1388 = vsel %vm1303, %v1284, %v1260
      %v1389 = vsel %vm1285, %v1290, %v1287
      %v1390 = vsel %vm1288, %v1293, %v1389
      %v1391 = vsel %vm1291, %v1296, %v1390
      %v1392 = vsel %vm1294, %v1299, %v1391
      %v1393 = vsel %vm1297, %v1302, %v1392
      %1394 = vrot.lane.b32.xlu0 %v1388, 48
      %v1395 = vpop.permute.xlu0 %1394
      %1396 = vrot.lane.b32.xlu0 %v1393, 48
      %v1397 = vpop.permute.xlu0 %1396
      %vm1400 = vcmask 458118
      %1401 = vst.msk [vmem:[%s1306 - $0x6] sm:$0xc0] %vm1400, %v1395
      %vm1402 = vcmask 456064
      %1403 = vst.msk [vmem:[%s1306 + $0x2] sm:$0x3f] %vm1402, %v1397
      %v1404 = vsel %vm1285, %v1287, %v1284
      %v1405 = vsel %vm1288, %v1290, %v1404
      %v1406 = vsel %vm1291, %v1293, %v1405
      %v1407 = vsel %vm1294, %v1296, %v1406
      %v1408 = vsel %vm1297, %v1299, %v1407
      %v1409 = vsel %vm1300, %v1302, %v1408
      %1410 = vrot.lane.b32.xlu0 %v1260, 56
      %v1411 = vpop.permute.xlu0 %1410
      %1412 = vrot.lane.b32.xlu0 %v1409, 56
      %v1413 = vpop.permute.xlu0 %1412
      %vm1416 = vcmask 523719
      %1417 = vst.msk [vmem:[%s1306 - $0x7] sm:$0x80] %vm1416, %v1411
      %vm1418 = vcmask 522688
      %1419 = vst.msk [vmem:[%s1306 + $0x1] sm:$0x7f] %vm1418, %v1413
      %v1428 = vrot.slane %v1263, 7
      %v1429 = vsel %vm1285, %v1428, %v1261
      %v1430 = vrot.slane %v1265, 6
      %v1431 = vsel %vm1288, %v1430, %v1429
      %v1432 = vrot.slane %v1267, 5
      %v1433 = vsel %vm1291, %v1432, %v1431
      %v1434 = vrot.slane %v1269, 4
      %v1435 = vsel %vm1294, %v1434, %v1433
      %v1436 = vrot.slane %v1271, 3
      %v1437 = vsel %vm1297, %v1436, %v1435
      %v1438 = vrot.slane %v1273, 2
      %v1439 = vsel %vm1300, %v1438, %v1437
      %v1440 = vrot.slane %v1275, 1
      %v1441 = vsel %vm1303, %v1440, %v1439
      %1442 = vrot.lane.b32.xlu0 %v1441, 64
      %v1443 = vpop.permute.xlu0 %1442
      %vm1445 = vcmask 589312
      %1446 = vst.msk [vmem:[%s1306] sm:$0xff] %vm1445, %v1443
      %v1447 = vsel %vm1288, %v1428, %v1261
      %v1448 = vsel %vm1291, %v1430, %v1447
      %v1449 = vsel %vm1294, %v1432, %v1448
      %v1450 = vsel %vm1297, %v1434, %v1449
      %v1451 = vsel %vm1300, %v1436, %v1450
      %v1452 = vsel %vm1303, %v1438, %v1451
      %1453 = vrot.lane.b32.xlu0 %v1452, 72
      %v1454 = vpop.permute.xlu0 %1453
      %1455 = vrot.lane.b32.xlu0 %v1440, 72
      %v1456 = vpop.permute.xlu0 %1455
      %vm1459 = vcmask 654913
      %1460 = vst.msk [vmem:[%s1306 - $0x1] sm:$0xfe] %vm1459, %v1454
      %vm1461 = vcmask 647744
      %1462 = vst.msk [vmem:[%s1306 + $0x7] sm:$0x1] %vm1461, %v1456
      %v1463 = vsel %vm1291, %v1428, %v1261
      %v1464 = vsel %vm1294, %v1430, %v1463
      %v1465 = vsel %vm1297, %v1432, %v1464
      %v1466 = vsel %vm1300, %v1434, %v1465
      %v1467 = vsel %vm1303, %v1436, %v1466
      %v1468 = vsel %vm1285, %v1440, %v1438
      %1469 = vrot.lane.b32.xlu0 %v1467, 80
      %v1470 = vpop.permute.xlu0 %1469
      %1471 = vrot.lane.b32.xlu0 %v1468, 80
      %v1472 = vpop.permute.xlu0 %1471
      %vm1475 = vcmask 720514
      %1476 = vst.msk [vmem:[%s1306 - $0x2] sm:$0xfc] %vm1475, %v1470
      %vm1477 = vcmask 714368
      %1478 = vst.msk [vmem:[%s1306 + $0x6] sm:$0x3] %vm1477, %v1472
      %v1479 = vsel %vm1294, %v1428, %v1261
      %v1480 = vsel %vm1297, %v1430, %v1479
      %v1481 = vsel %vm1300, %v1432, %v1480
      %v1482 = vsel %vm1303, %v1434, %v1481
      %v1483 = vsel %vm1285, %v1438, %v1436
      %v1484 = vsel %vm1288, %v1440, %v1483
      %1485 = vrot.lane.b32.xlu0 %v1482, 88
      %v1486 = vpop.permute.xlu0 %1485
      %1487 = vrot.lane.b32.xlu0 %v1484, 88
      %v1488 = vpop.permute.xlu0 %1487
      %vm1491 = vcmask 786115
      %1492 = vst.msk [vmem:[%s1306 - $0x3] sm:$0xf8] %vm1491, %v1486
      %vm1493 = vcmask 780992
      %1494 = vst.msk [vmem:[%s1306 + $0x5] sm:$0x7] %vm1493, %v1488
      %v1495 = vsel %vm1297, %v1428, %v1261
      %v1496 = vsel %vm1300, %v1430, %v1495
      %v1497 = vsel %vm1303, %v1432, %v1496
      %v1498 = vsel %vm1285, %v1436, %v1434
      %v1499 = vsel %vm1288, %v1438, %v1498
      %v1500 = vsel %vm1291, %v1440, %v1499
      %1501 = vrot.lane.b32.xlu0 %v1497, 96
      %v1502 = vpop.permute.xlu0 %1501
      %1503 = vrot.lane.b32.xlu0 %v1500, 96
      %v1504 = vpop.permute.xlu0 %1503
      %vm1507 = vcmask 851716
      %1508 = vst.msk [vmem:[%s1306 - $0x4] sm:$0xf0] %vm1507, %v1502
      %vm1509 = vcmask 847616
      %1510 = vst.msk [vmem:[%s1306 + $0x4] sm:$0xf] %vm1509, %v1504
      %v1511 = vsel %vm1300, %v1428, %v1261
      %v1512 = vsel %vm1303, %v1430, %v1511
      %v1513 = vsel %vm1285, %v1434, %v1432
      %v1514 = vsel %vm1288, %v1436, %v1513
      %v1515 = vsel %vm1291, %v1438, %v1514
      %v1516 = vsel %vm1294, %v1440, %v1515
      %1517 = vrot.lane.b32.xlu0 %v1512, 104
      %v1518 = vpop.permute.xlu0 %1517
      %1519 = vrot.lane.b32.xlu0 %v1516, 104
      %v1520 = vpop.permute.xlu0 %1519
      %vm1523 = vcmask 917317
      %1524 = vst.msk [vmem:[%s1306 - $0x5] sm:$0xe0] %vm1523, %v1518
      %vm1525 = vcmask 914240
      %1526 = vst.msk [vmem:[%s1306 + $0x3] sm:$0x1f] %vm1525, %v1520
      %v1527 = vsel %vm1303, %v1428, %v1261
      %v1528 = vsel %vm1285, %v1432, %v1430
      %v1529 = vsel %vm1288, %v1434, %v1528
      %v1530 = vsel %vm1291, %v1436, %v1529
      %v1531 = vsel %vm1294, %v1438, %v1530
      %v1532 = vsel %vm1297, %v1440, %v1531
      %1533 = vrot.lane.b32.xlu0 %v1527, 112
      %v1534 = vpop.permute.xlu0 %1533
      %1535 = vrot.lane.b32.xlu0 %v1532, 112
      %v1536 = vpop.permute.xlu0 %1535
      %vm1539 = vcmask 982918
      %1540 = vst.msk [vmem:[%s1306 - $0x6] sm:$0xc0] %vm1539, %v1534
      %vm1541 = vcmask 980864
      %1542 = vst.msk [vmem:[%s1306 + $0x2] sm:$0x3f] %vm1541, %v1536
      %v1543 = vsel %vm1285, %v1430, %v1428
      %v1544 = vsel %vm1288, %v1432, %v1543
      %v1545 = vsel %vm1291, %v1434, %v1544
      %v1546 = vsel %vm1294, %v1436, %v1545
      %v1547 = vsel %vm1297, %v1438, %v1546
      %v1548 = vsel %vm1300, %v1440, %v1547
      %1549 = vrot.lane.b32.xlu0 %v1261, 120
      %v1550 = vpop.permute.xlu0 %1549
      %1551 = vrot.lane.b32.xlu0 %v1548, 120
      %v1552 = vpop.permute.xlu0 %1551
      %vm1555 = vcmask 1048519
      %1556 = vst.msk [vmem:[%s1306 - $0x7] sm:$0x80] %vm1555, %v1550
      %vm1557 = vcmask 1047488
      %1558 = vst.msk [vmem:[%s1306 + $0x1] sm:$0x7f] %vm1557, %v1552
    $region22: #{gnn_forward.1} parent=1 // loop_footer
      %s48 = sadd.s32 1, %s44
    $region23: #{gnn_forward.1} parent=1 // loop_footer_branch
      %43 = sbr.rel target = $region19
    $region24: #{gnn_forward.1} parent=1 // loop_exit
      _
    // Predicated region
    $region25: #{gnn_forward.1} parent=1 // pred_check
      _
    $region26: #{gnn_forward.1} parent=1 // pred_check_branch
      %1560 = sbr.rel (0) target = $region28
    $region27: #{gnn_forward.1} parent=1 // pred_region
      %s1562 = ssub.s32 1024, 1024
      %1563 = vsyncadd [#allocation4], %s1562
      %s1564 = sshll.u32 [#allocation3], 4
      %s1565 = int_to_ptr.vmem [resolvable:$true] %s1564
      %1570 = dma.vmem_to_hbm [thread:$0]  %s1565, 1024, %s4, [#allocation4], 128, 128, 8
    $region28: #{gnn_forward.1} parent=1 // pred_fallthru
      _
    // Predicated region
    $region29: #{gnn_forward.1} parent=1 // pred_check
      _
    $region30: #{gnn_forward.1} parent=1 // pred_check_branch
      %1572 = sbr.rel (0) target = $region32
    $region31: #{gnn_forward.1} parent=1 // pred_region
      %1573 = dma.done [#allocation4], 1024
    $region32: #{gnn_forward.1} parent=1 // pred_fallthru
      _
    %1574 = vsyncpa [#allocation4], 1

</llo_original>
